<compile_context>
chip_gen: v6e
topology: v6e:2x2x1
jax: 0.10.0
libtpu: 0.0.40
codegen_flags: <defaults>
</compile_context>

<pallas_src>
import jax
import jax.numpy as jnp
from jax.experimental import pallas as pl
from jax.experimental.pallas import tpu as pltpu

INPUT_SIZE = 784            # 28 * 28
N_CLASSES = 10
PADDED_CLASSES = 128        # lane-dense output width (zero-padded, sliced in wrapper)
HIDDEN = (512, 128, 64)
MAX_TM = 256                # batch tile; safe against v5e's 16 MiB scoped-VMEM default


def _round_up(n, m):
    return ((n + m - 1) // m) * m


def _mlp_kernel(x_ref, w1_ref, b1_ref, w2_ref, b2_ref, w3_ref, b3_ref,
                w4_ref, b4_ref, o_ref):
    """Fused 4-layer MLP on one (TM, 784) batch tile: (Linear+ReLU) x3 -> Linear."""
    h = jnp.dot(x_ref[...], w1_ref[...], preferred_element_type=jnp.float32) + b1_ref[...]
    h = jnp.maximum(h, 0.0).astype(jnp.bfloat16)
    h = jnp.dot(h, w2_ref[...], preferred_element_type=jnp.float32) + b2_ref[...]
    h = jnp.maximum(h, 0.0).astype(jnp.bfloat16)
    h = jnp.dot(h, w3_ref[...], preferred_element_type=jnp.float32) + b3_ref[...]
    h = jnp.maximum(h, 0.0).astype(jnp.bfloat16)
    o_ref[...] = (jnp.dot(h, w4_ref[...], preferred_element_type=jnp.float32)
                  + b4_ref[...]).astype(o_ref.dtype)


@jax.jit
def mnist_mlp_forward(x, params):
    """x: (B, 1, 28, 28) float32 (NCHW). Returns logits (B, N_CLASSES) float32."""
    w1, b1, w2, b2, w3, b3, w4, b4 = params
    B = x.shape[0]
    x_flat = x.reshape(B, -1).astype(jnp.bfloat16)            # nn.Flatten + bf16 cast

    # bf16 weights (MXU throughput + VMEM/HBM savings); biases stay f32.
    w1b = w1.astype(jnp.bfloat16)
    w2b = w2.astype(jnp.bfloat16)
    w3b = w3.astype(jnp.bfloat16)
    # Lane-dense output: zero-pad the final layer from 10 to 128 output lanes.
    w4b = jnp.pad(w4.astype(jnp.bfloat16), ((0, 0), (0, PADDED_CLASSES - N_CLASSES)))
    b4p = jnp.pad(b4, ((0, 0), (0, PADDED_CLASSES - N_CLASSES)))

    # Batch tile: as large as possible, but never larger than the (8-aligned) batch.
    TM = min(MAX_TM, _round_up(B, 8))
    B_pad = _round_up(B, TM)
    if B_pad != B:
        # Only materialized when B is not a multiple of TM.
        x_flat = jnp.pad(x_flat, ((0, B_pad - B), (0, 0)))
    # TODO(synk): K of the first matmul is 784 (multiple of 8, not of 128); padding it
    # to 896 would force a materialized copy of x, so it is intentionally left ragged.

    grid = (B_pad // TM,)

    def batch_tile(feat):
        return pl.BlockSpec((TM, feat), lambda i: (i, 0))

    def resident(arr):
        # Whole (small) array resident in VMEM; constant index_map -> fetched once.
        return pl.BlockSpec(arr.shape, lambda i: (0,) * arr.ndim)

    out = pl.pallas_call(
        _mlp_kernel,
        out_shape=jax.ShapeDtypeStruct((B_pad, PADDED_CLASSES), jnp.float32),
        grid_spec=pltpu.PrefetchScalarGridSpec(
            num_scalar_prefetch=0,
            grid=grid,
            in_specs=[
                batch_tile(INPUT_SIZE),                        # x tile (TM, 784) bf16
                resident(w1b), resident(b1),
                resident(w2b), resident(b2),
                resident(w3b), resident(b3),
                resident(w4b), resident(b4p),
            ],
            out_specs=batch_tile(PADDED_CLASSES),              # (TM, 128) lane-dense
        ),
        compiler_params=pltpu.CompilerParams(
            dimension_semantics=("parallel",),                 # batch axis -> megacore
        ),
    )(x_flat, w1b, b1, w2b, b2, w3b, b3, w4b, b4p)

    return out[:B, :N_CLASSES]


def init_params(key):
    """Deterministic init matching nn.Linear's U(-1/sqrt(fan_in), 1/sqrt(fan_in))."""
    dims = (INPUT_SIZE,) + HIDDEN + (N_CLASSES,)
    params = []
    for i in range(len(dims) - 1):
        fan_in, fan_out = dims[i], dims[i + 1]
        key, kw, kb = jax.random.split(key, 3)
        bound = 1.0 / (fan_in ** 0.5)
        # stored as (in, out) == PyTorch weight.T
        w = jax.random.uniform(kw, (fan_in, fan_out), jnp.float32, -bound, bound)
        b = jax.random.uniform(kb, (1, fan_out), jnp.float32, -bound, bound)
        params.extend([w, b])
    return tuple(params)


def reference_forward(x, params):
    """Plain-JAX f32 reference for correctness checking."""
    w1, b1, w2, b2, w3, b3, w4, b4 = params
    h = x.reshape(x.shape[0], -1)
    h = jnp.maximum(h @ w1 + b1, 0.0)
    h = jnp.maximum(h @ w2 + b2, 0.0)
    h = jnp.maximum(h @ w3 + b3, 0.0)
    return h @ w4 + b4


if __name__ == "__main__":
    key = jax.random.PRNGKey(0)
    k_params, k_x = jax.random.split(key)

    params = init_params(k_params)
    x = jax.random.normal(k_x, (2, 1, 28, 28), jnp.float32)   # NCHW like PyTorch

    logits = mnist_mlp_forward(x, params)
    jax.block_until_ready(logits)

    ref = reference_forward(x, params)
    assert logits.shape == (2, N_CLASSES), logits.shape
    # bf16 weights/activations (f32 accumulation) vs the f32 reference: loosened tolerance.
    assert jnp.allclose(logits, ref, atol=2e-2, rtol=2e-2), "mismatch vs reference"

    print("KERNEL_OK")
</pallas_src>

<mosaic_0001>
module attributes {stable_mosaic.version = 11 : i64} {
  func.func @_mlp_kernel(%arg0: i32, %arg1: memref<8x784xbf16, #tpu.memory_space<vmem>>, %arg2: memref<784x512xbf16, #tpu.memory_space<vmem>>, %arg3: memref<1x512xf32, #tpu.memory_space<vmem>>, %arg4: memref<512x128xbf16, #tpu.memory_space<vmem>>, %arg5: memref<1x128xf32, #tpu.memory_space<vmem>>, %arg6: memref<128x64xbf16, #tpu.memory_space<vmem>>, %arg7: memref<1x64xf32, #tpu.memory_space<vmem>>, %arg8: memref<64x128xbf16, #tpu.memory_space<vmem>>, %arg9: memref<1x128xf32, #tpu.memory_space<vmem>>, %arg10: memref<8x128xf32, #tpu.memory_space<vmem>>) attributes {dimension_semantics = [#tpu.dimension_semantics<parallel>], iteration_bounds = array<i64: 1>, scalar_prefetch = 0 : i64, scratch_operands = 0 : i64, tpu.core_type = #tpu.core_type<tc>, window_params = [{transform_indices = @transform_0, window_bounds = array<i64: 8, 784>}, {pipeline_mode = #tpu.pipeline_mode<synchronous>, transform_indices = @transform_1, window_bounds = array<i64: 784, 512>}, {pipeline_mode = #tpu.pipeline_mode<synchronous>, transform_indices = @transform_2, window_bounds = array<i64: 1, 512>}, {pipeline_mode = #tpu.pipeline_mode<synchronous>, transform_indices = @transform_3, window_bounds = array<i64: 512, 128>}, {pipeline_mode = #tpu.pipeline_mode<synchronous>, transform_indices = @transform_4, window_bounds = array<i64: 1, 128>}, {pipeline_mode = #tpu.pipeline_mode<synchronous>, transform_indices = @transform_5, window_bounds = array<i64: 128, 64>}, {pipeline_mode = #tpu.pipeline_mode<synchronous>, transform_indices = @transform_6, window_bounds = array<i64: 1, 64>}, {pipeline_mode = #tpu.pipeline_mode<synchronous>, transform_indices = @transform_7, window_bounds = array<i64: 64, 128>}, {pipeline_mode = #tpu.pipeline_mode<synchronous>, transform_indices = @transform_8, window_bounds = array<i64: 1, 128>}, {transform_indices = @transform_9, window_bounds = array<i64: 8, 128>}]} {
    %c0 = arith.constant 0 : index
    %c0_0 = arith.constant 0 : index
    %0 = vector.load %arg1[%c0, %c0_0] : memref<8x784xbf16, #tpu.memory_space<vmem>>, vector<8x784xbf16>
    %c0_1 = arith.constant 0 : index
    %c0_2 = arith.constant 0 : index
    %1 = vector.load %arg2[%c0_1, %c0_2] : memref<784x512xbf16, #tpu.memory_space<vmem>>, vector<784x512xbf16>
    %cst = arith.constant dense<0.000000e+00> : vector<8x512xf32>
    %2 = tpu.matmul %0, %1, %cst {dimension_numbers = #tpu.dot_dimension_numbers<[1], [0], [0], [1], [0, 0, 1, 1], [], []>} : vector<8x784xbf16>, vector<784x512xbf16>, vector<8x512xf32> -> vector<8x512xf32>
    %c0_3 = arith.constant 0 : index
    %c0_4 = arith.constant 0 : index
    %3 = vector.load %arg3[%c0_3, %c0_4] : memref<1x512xf32, #tpu.memory_space<vmem>>, vector<1x512xf32>
    %4 = vector.broadcast %3 : vector<1x512xf32> to vector<8x512xf32>
    %5 = arith.addf %2, %4 : vector<8x512xf32>
    %cst_5 = arith.constant 0.000000e+00 : f32
    %6 = vector.broadcast %cst_5 : f32 to vector<8x512xf32>
    %7 = arith.maximumf %5, %6 : vector<8x512xf32>
    %8 = arith.truncf %7 : vector<8x512xf32> to vector<8x512xbf16>
    %c0_6 = arith.constant 0 : index
    %c0_7 = arith.constant 0 : index
    %9 = vector.load %arg4[%c0_6, %c0_7] : memref<512x128xbf16, #tpu.memory_space<vmem>>, vector<512x128xbf16>
    %cst_8 = arith.constant dense<0.000000e+00> : vector<8x128xf32>
    %10 = tpu.matmul %8, %9, %cst_8 {dimension_numbers = #tpu.dot_dimension_numbers<[1], [0], [0], [1], [0, 0, 1, 1], [], []>} : vector<8x512xbf16>, vector<512x128xbf16>, vector<8x128xf32> -> vector<8x128xf32>
    %c0_9 = arith.constant 0 : index
    %c0_10 = arith.constant 0 : index
    %11 = vector.load %arg5[%c0_9, %c0_10] : memref<1x128xf32, #tpu.memory_space<vmem>>, vector<1x128xf32>
    %12 = vector.broadcast %11 : vector<1x128xf32> to vector<8x128xf32>
    %13 = arith.addf %10, %12 : vector<8x128xf32>
    %cst_11 = arith.constant 0.000000e+00 : f32
    %14 = vector.broadcast %cst_11 : f32 to vector<8x128xf32>
    %15 = arith.maximumf %13, %14 : vector<8x128xf32>
    %16 = arith.truncf %15 : vector<8x128xf32> to vector<8x128xbf16>
    %c0_12 = arith.constant 0 : index
    %c0_13 = arith.constant 0 : index
    %17 = vector.load %arg6[%c0_12, %c0_13] : memref<128x64xbf16, #tpu.memory_space<vmem>>, vector<128x64xbf16>
    %cst_14 = arith.constant dense<0.000000e+00> : vector<8x64xf32>
    %18 = tpu.matmul %16, %17, %cst_14 {dimension_numbers = #tpu.dot_dimension_numbers<[1], [0], [0], [1], [0, 0, 1, 1], [], []>} : vector<8x128xbf16>, vector<128x64xbf16>, vector<8x64xf32> -> vector<8x64xf32>
    %c0_15 = arith.constant 0 : index
    %c0_16 = arith.constant 0 : index
    %19 = vector.load %arg7[%c0_15, %c0_16] : memref<1x64xf32, #tpu.memory_space<vmem>>, vector<1x64xf32>
    %20 = vector.broadcast %19 : vector<1x64xf32> to vector<8x64xf32>
    %21 = arith.addf %18, %20 : vector<8x64xf32>
    %cst_17 = arith.constant 0.000000e+00 : f32
    %22 = vector.broadcast %cst_17 : f32 to vector<8x64xf32>
    %23 = arith.maximumf %21, %22 : vector<8x64xf32>
    %24 = arith.truncf %23 : vector<8x64xf32> to vector<8x64xbf16>
    %c0_18 = arith.constant 0 : index
    %c0_19 = arith.constant 0 : index
    %25 = vector.load %arg8[%c0_18, %c0_19] : memref<64x128xbf16, #tpu.memory_space<vmem>>, vector<64x128xbf16>
    %cst_20 = arith.constant dense<0.000000e+00> : vector<8x128xf32>
    %26 = tpu.matmul %24, %25, %cst_20 {dimension_numbers = #tpu.dot_dimension_numbers<[1], [0], [0], [1], [0, 0, 1, 1], [], []>} : vector<8x64xbf16>, vector<64x128xbf16>, vector<8x128xf32> -> vector<8x128xf32>
    %c0_21 = arith.constant 0 : index
    %c0_22 = arith.constant 0 : index
    %27 = vector.load %arg9[%c0_21, %c0_22] : memref<1x128xf32, #tpu.memory_space<vmem>>, vector<1x128xf32>
    %28 = vector.broadcast %27 : vector<1x128xf32> to vector<8x128xf32>
    %29 = arith.addf %26, %28 : vector<8x128xf32>
    %c0_23 = arith.constant 0 : index
    %c0_24 = arith.constant 0 : index
    %30 = vector.load %arg10[%c0_23, %c0_24] : memref<8x128xf32, #tpu.memory_space<vmem>>, vector<8x128xf32>
    tpu.vector_store %arg10[%c0_23, %c0_24], %29 {strides = array<i32>} : memref<8x128xf32, #tpu.memory_space<vmem>>, vector<8x128xf32>,
    return
  }
  func.func @transform_0(%arg0: i32) -> (i32, i32) {
    %c0_i32 = arith.constant 0 : i32
    %c0_i32_0 = arith.constant 0 : i32
    return %arg0, %c0_i32 : i32, i32
  }
  func.func @transform_1(%arg0: i32) -> (i32, i32) {
    %c0_i32 = arith.constant 0 : i32
    %c0_i32_0 = arith.constant 0 : i32
    %c0_i32_1 = arith.constant 0 : i32
    return %c0_i32, %c0_i32_0 : i32, i32
  }
  func.func @transform_2(%arg0: i32) -> (i32, i32) {
    %c0_i32 = arith.constant 0 : i32
    %c0_i32_0 = arith.constant 0 : i32
    %c0_i32_1 = arith.constant 0 : i32
    return %c0_i32, %c0_i32_0 : i32, i32
  }
  func.func @transform_3(%arg0: i32) -> (i32, i32) {
    %c0_i32 = arith.constant 0 : i32
    %c0_i32_0 = arith.constant 0 : i32
    %c0_i32_1 = arith.constant 0 : i32
    return %c0_i32, %c0_i32_0 : i32, i32
  }
  func.func @transform_4(%arg0: i32) -> (i32, i32) {
    %c0_i32 = arith.constant 0 : i32
    %c0_i32_0 = arith.constant 0 : i32
    %c0_i32_1 = arith.constant 0 : i32
    return %c0_i32, %c0_i32_0 : i32, i32
  }
  func.func @transform_5(%arg0: i32) -> (i32, i32) {
    %c0_i32 = arith.constant 0 : i32
    %c0_i32_0 = arith.constant 0 : i32
    %c0_i32_1 = arith.constant 0 : i32
    return %c0_i32, %c0_i32_0 : i32, i32
  }
  func.func @transform_6(%arg0: i32) -> (i32, i32) {
    %c0_i32 = arith.constant 0 : i32
    %c0_i32_0 = arith.constant 0 : i32
    %c0_i32_1 = arith.constant 0 : i32
    return %c0_i32, %c0_i32_0 : i32, i32
  }
  func.func @transform_7(%arg0: i32) -> (i32, i32) {
    %c0_i32 = arith.constant 0 : i32
    %c0_i32_0 = arith.constant 0 : i32
    %c0_i32_1 = arith.constant 0 : i32
    return %c0_i32, %c0_i32_0 : i32, i32
  }
  func.func @transform_8(%arg0: i32) -> (i32, i32) {
    %c0_i32 = arith.constant 0 : i32
    %c0_i32_0 = arith.constant 0 : i32
    %c0_i32_1 = arith.constant 0 : i32
    return %c0_i32, %c0_i32_0 : i32, i32
  }
  func.func @transform_9(%arg0: i32) -> (i32, i32) {
    %c0_i32 = arith.constant 0 : i32
    %c0_i32_0 = arith.constant 0 : i32
    return %arg0, %c0_i32 : i32, i32
  }
}

</mosaic_0001>

<llo_original>
// kernel: mnist_mlp_forward.1
$region0: #{mnist_mlp_forward.1}
  #allocation0 [shape = 'u32[]', space=smem, size = 0x4, offset = 0x4, fixed_abs, tag = 'smem constant byte address 0x4 - core index']
  #allocation1 [shape = 'u32[144,128]{1,0:T(1,128)}', space=vmem, size = 0x12000, scoped, tag = 'internal scratch']
  %s0 = inlined_call_operand.vmem [shape: bf16[8,784], index: 0, kind: input, shape index: {}]
  %s1 = inlined_call_operand.vmem [shape: bf16[784,512], index: 1, kind: input, shape index: {}]
  %s2 = inlined_call_operand.vmem [shape: f32[1,512], index: 2, kind: input, shape index: {}]
  %s3 = inlined_call_operand.vmem [shape: bf16[512,128], index: 3, kind: input, shape index: {}]
  %s4 = inlined_call_operand.vmem [shape: f32[1,128], index: 4, kind: input, shape index: {}]
  %s5 = inlined_call_operand.vmem [shape: bf16[128,64], index: 5, kind: input, shape index: {}]
  %s6 = inlined_call_operand.vmem [shape: f32[1,64], index: 6, kind: input, shape index: {}]
  %s7 = inlined_call_operand.vmem [shape: bf16[64,128], index: 7, kind: input, shape index: {}]
  %s8 = inlined_call_operand.vmem [shape: f32[1,128], index: 8, kind: input, shape index: {}]
  %s9 = inlined_call_operand.vmem [shape: f32[8,128], index: 9, kind: output, shape index: {}]
  %s10 = sld [smem:[#allocation0]]
  $region46: #{mnist_mlp_forward.1} parent=0
    _
  %s12 = ssub.s32 1, %s10
  %s13 = scalar_select 0, %s12, %s10
  // Predicated region
  $region2: #{mnist_mlp_forward.1} parent=0 // pred_check
    _
  $region3: #{mnist_mlp_forward.1} parent=0 // pred_check_branch
    %15 = sbr.rel (0) target = $region5
  $region4: #{mnist_mlp_forward.1} parent=0 // pred_region
    _
  $region5: #{mnist_mlp_forward.1} parent=0 // pred_fallthru
    _
  // Predicated region
  $region6: #{mnist_mlp_forward.1} parent=0 // pred_check
    _
  $region7: #{mnist_mlp_forward.1} parent=0 // pred_check_branch
    %17 = sbr.rel (0) target = $region9
  $region8: #{mnist_mlp_forward.1} parent=0 // pred_region
    _
  $region9: #{mnist_mlp_forward.1} parent=0 // pred_fallthru
    _
  // Predicated region
  $region10: #{mnist_mlp_forward.1} parent=0 // pred_check
    _
  $region11: #{mnist_mlp_forward.1} parent=0 // pred_check_branch
    %19 = sbr.rel (0) target = $region13
  $region12: #{mnist_mlp_forward.1} parent=0 // pred_region
    _
  $region13: #{mnist_mlp_forward.1} parent=0 // pred_fallthru
    _
  // Predicated region
  $region14: #{mnist_mlp_forward.1} parent=0 // pred_check
    _
  $region15: #{mnist_mlp_forward.1} parent=0 // pred_check_branch
    %21 = sbr.rel (0) target = $region17
  $region16: #{mnist_mlp_forward.1} parent=0 // pred_region
    _
  $region17: #{mnist_mlp_forward.1} parent=0 // pred_fallthru
    _
  // Predicated region
  $region18: #{mnist_mlp_forward.1} parent=0 // pred_check
    _
  $region19: #{mnist_mlp_forward.1} parent=0 // pred_check_branch
    %23 = sbr.rel (0) target = $region21
  $region20: #{mnist_mlp_forward.1} parent=0 // pred_region
    _
  $region21: #{mnist_mlp_forward.1} parent=0 // pred_fallthru
    _
  // Predicated region
  $region22: #{mnist_mlp_forward.1} parent=0 // pred_check
    _
  $region23: #{mnist_mlp_forward.1} parent=0 // pred_check_branch
    %25 = sbr.rel (0) target = $region25
  $region24: #{mnist_mlp_forward.1} parent=0 // pred_region
    _
  $region25: #{mnist_mlp_forward.1} parent=0 // pred_fallthru
    _
  // Predicated region
  $region26: #{mnist_mlp_forward.1} parent=0 // pred_check
    _
  $region27: #{mnist_mlp_forward.1} parent=0 // pred_check_branch
    %27 = sbr.rel (0) target = $region29
  $region28: #{mnist_mlp_forward.1} parent=0 // pred_region
    _
  $region29: #{mnist_mlp_forward.1} parent=0 // pred_fallthru
    _
  // Predicated region
  $region30: #{mnist_mlp_forward.1} parent=0 // pred_check
    _
  $region31: #{mnist_mlp_forward.1} parent=0 // pred_check_branch
    %29 = sbr.rel (0) target = $region33
  $region32: #{mnist_mlp_forward.1} parent=0 // pred_region
    _
  $region33: #{mnist_mlp_forward.1} parent=0 // pred_fallthru
    _
  // Predicated region
  $region34: #{mnist_mlp_forward.1} parent=0 // pred_check
    _
  $region35: #{mnist_mlp_forward.1} parent=0 // pred_check_branch
    %31 = sbr.rel (0) target = $region37
  $region36: #{mnist_mlp_forward.1} parent=0 // pred_region
    _
  $region37: #{mnist_mlp_forward.1} parent=0 // pred_fallthru
    _
  %v33 = vld [vmem:[%s0] sm:$0xff]
  %v34 = vld [vmem:[%s0 + $0x8] sm:$0xff]
  %v35 = vld [vmem:[%s0 + $0x10] sm:$0xff]
  %v36 = vld [vmem:[%s0 + $0x18] sm:$0xf]
  %v37 = vld [vmem:[%s1] sm:$0xff]
  %v38 = vld [vmem:[%s1 + $0x8] sm:$0xff]
  %v39 = vld [vmem:[%s1 + $0x10] sm:$0xff]
  %v40 = vld [vmem:[%s1 + $0x18] sm:$0xff]
  %v41 = vld [vmem:[%s1 + $0x20] sm:$0xff]
  %v42 = vld [vmem:[%s1 + $0x28] sm:$0xff]
  %v43 = vld [vmem:[%s1 + $0x30] sm:$0xff]
  %v44 = vld [vmem:[%s1 + $0x38] sm:$0xff]
  %v45 = vld [vmem:[%s1 + $0x40] sm:$0xff]
  %v46 = vld [vmem:[%s1 + $0x48] sm:$0xff]
  %v47 = vld [vmem:[%s1 + $0x50] sm:$0xff]
  %v48 = vld [vmem:[%s1 + $0x58] sm:$0xff]
  %v49 = vld [vmem:[%s1 + $0x60] sm:$0xff]
  %v50 = vld [vmem:[%s1 + $0x68] sm:$0xff]
  %v51 = vld [vmem:[%s1 + $0x70] sm:$0xff]
  %v52 = vld [vmem:[%s1 + $0x78] sm:$0xff]
  %v53 = vld [vmem:[%s1 + $0x80] sm:$0xff]
  %v54 = vld [vmem:[%s1 + $0x88] sm:$0xff]
  %v55 = vld [vmem:[%s1 + $0x90] sm:$0xff]
  %v56 = vld [vmem:[%s1 + $0x98] sm:$0xff]
  %v57 = vld [vmem:[%s1 + $0xa0] sm:$0xff]
  %v58 = vld [vmem:[%s1 + $0xa8] sm:$0xff]
  %v59 = vld [vmem:[%s1 + $0xb0] sm:$0xff]
  %v60 = vld [vmem:[%s1 + $0xb8] sm:$0xff]
  %v61 = vld [vmem:[%s1 + $0xc0] sm:$0xff]
  %v62 = vld [vmem:[%s1 + $0xc8] sm:$0xff]
  %v63 = vld [vmem:[%s1 + $0xd0] sm:$0xff]
  %v64 = vld [vmem:[%s1 + $0xd8] sm:$0xff]
  %v65 = vld [vmem:[%s1 + $0xe0] sm:$0xff]
  %v66 = vld [vmem:[%s1 + $0xe8] sm:$0xff]
  %v67 = vld [vmem:[%s1 + $0xf0] sm:$0xff]
  %v68 = vld [vmem:[%s1 + $0xf8] sm:$0xff]
  %v69 = vld [vmem:[%s1 + $0x100] sm:$0xff]
  %v70 = vld [vmem:[%s1 + $0x108] sm:$0xff]
  %v71 = vld [vmem:[%s1 + $0x110] sm:$0xff]
  %v72 = vld [vmem:[%s1 + $0x118] sm:$0xff]
  %v73 = vld [vmem:[%s1 + $0x120] sm:$0xff]
  %v74 = vld [vmem:[%s1 + $0x128] sm:$0xff]
  %v75 = vld [vmem:[%s1 + $0x130] sm:$0xff]
  %v76 = vld [vmem:[%s1 + $0x138] sm:$0xff]
  %v77 = vld [vmem:[%s1 + $0x140] sm:$0xff]
  %v78 = vld [vmem:[%s1 + $0x148] sm:$0xff]
  %v79 = vld [vmem:[%s1 + $0x150] sm:$0xff]
  %v80 = vld [vmem:[%s1 + $0x158] sm:$0xff]
  %v81 = vld [vmem:[%s1 + $0x160] sm:$0xff]
  %v82 = vld [vmem:[%s1 + $0x168] sm:$0xff]
  %v83 = vld [vmem:[%s1 + $0x170] sm:$0xff]
  %v84 = vld [vmem:[%s1 + $0x178] sm:$0xff]
  %v85 = vld [vmem:[%s1 + $0x180] sm:$0xff]
  %v86 = vld [vmem:[%s1 + $0x188] sm:$0xff]
  %v87 = vld [vmem:[%s1 + $0x190] sm:$0xff]
  %v88 = vld [vmem:[%s1 + $0x198] sm:$0xff]
  %v89 = vld [vmem:[%s1 + $0x1a0] sm:$0xff]
  %v90 = vld [vmem:[%s1 + $0x1a8] sm:$0xff]
  %v91 = vld [vmem:[%s1 + $0x1b0] sm:$0xff]
  %v92 = vld [vmem:[%s1 + $0x1b8] sm:$0xff]
  %v93 = vld [vmem:[%s1 + $0x1c0] sm:$0xff]
  %v94 = vld [vmem:[%s1 + $0x1c8] sm:$0xff]
  %v95 = vld [vmem:[%s1 + $0x1d0] sm:$0xff]
  %v96 = vld [vmem:[%s1 + $0x1d8] sm:$0xff]
  %v97 = vld [vmem:[%s1 + $0x1e0] sm:$0xff]
  %v98 = vld [vmem:[%s1 + $0x1e8] sm:$0xff]
  %v99 = vld [vmem:[%s1 + $0x1f0] sm:$0xff]
  %v100 = vld [vmem:[%s1 + $0x1f8] sm:$0xff]
  %v101 = vld [vmem:[%s1 + $0x200] sm:$0xff]
  %v102 = vld [vmem:[%s1 + $0x208] sm:$0xff]
  %v103 = vld [vmem:[%s1 + $0x210] sm:$0xff]
  %v104 = vld [vmem:[%s1 + $0x218] sm:$0xff]
  %v105 = vld [vmem:[%s1 + $0x220] sm:$0xff]
  %v106 = vld [vmem:[%s1 + $0x228] sm:$0xff]
  %v107 = vld [vmem:[%s1 + $0x230] sm:$0xff]
  %v108 = vld [vmem:[%s1 + $0x238] sm:$0xff]
  %v109 = vld [vmem:[%s1 + $0x240] sm:$0xff]
  %v110 = vld [vmem:[%s1 + $0x248] sm:$0xff]
  %v111 = vld [vmem:[%s1 + $0x250] sm:$0xff]
  %v112 = vld [vmem:[%s1 + $0x258] sm:$0xff]
  %v113 = vld [vmem:[%s1 + $0x260] sm:$0xff]
  %v114 = vld [vmem:[%s1 + $0x268] sm:$0xff]
  %v115 = vld [vmem:[%s1 + $0x270] sm:$0xff]
  %v116 = vld [vmem:[%s1 + $0x278] sm:$0xff]
  %v117 = vld [vmem:[%s1 + $0x280] sm:$0xff]
  %v118 = vld [vmem:[%s1 + $0x288] sm:$0xff]
  %v119 = vld [vmem:[%s1 + $0x290] sm:$0xff]
  %v120 = vld [vmem:[%s1 + $0x298] sm:$0xff]
  %v121 = vld [vmem:[%s1 + $0x2a0] sm:$0xff]
  %v122 = vld [vmem:[%s1 + $0x2a8] sm:$0xff]
  %v123 = vld [vmem:[%s1 + $0x2b0] sm:$0xff]
  %v124 = vld [vmem:[%s1 + $0x2b8] sm:$0xff]
  %v125 = vld [vmem:[%s1 + $0x2c0] sm:$0xff]
  %v126 = vld [vmem:[%s1 + $0x2c8] sm:$0xff]
  %v127 = vld [vmem:[%s1 + $0x2d0] sm:$0xff]
  %v128 = vld [vmem:[%s1 + $0x2d8] sm:$0xff]
  %v129 = vld [vmem:[%s1 + $0x2e0] sm:$0xff]
  %v130 = vld [vmem:[%s1 + $0x2e8] sm:$0xff]
  %v131 = vld [vmem:[%s1 + $0x2f0] sm:$0xff]
  %v132 = vld [vmem:[%s1 + $0x2f8] sm:$0xff]
  %v133 = vld [vmem:[%s1 + $0x300] sm:$0xff]
  %v134 = vld [vmem:[%s1 + $0x308] sm:$0xff]
  %v135 = vld [vmem:[%s1 + $0x310] sm:$0xff]
  %v136 = vld [vmem:[%s1 + $0x318] sm:$0xff]
  %v137 = vld [vmem:[%s1 + $0x320] sm:$0xff]
  %v138 = vld [vmem:[%s1 + $0x328] sm:$0xff]
  %v139 = vld [vmem:[%s1 + $0x330] sm:$0xff]
  %v140 = vld [vmem:[%s1 + $0x338] sm:$0xff]
  %v141 = vld [vmem:[%s1 + $0x340] sm:$0xff]
  %v142 = vld [vmem:[%s1 + $0x348] sm:$0xff]
  %v143 = vld [vmem:[%s1 + $0x350] sm:$0xff]
  %v144 = vld [vmem:[%s1 + $0x358] sm:$0xff]
  %v145 = vld [vmem:[%s1 + $0x360] sm:$0xff]
  %v146 = vld [vmem:[%s1 + $0x368] sm:$0xff]
  %v147 = vld [vmem:[%s1 + $0x370] sm:$0xff]
  %v148 = vld [vmem:[%s1 + $0x378] sm:$0xff]
  %v149 = vld [vmem:[%s1 + $0x380] sm:$0xff]
  %v150 = vld [vmem:[%s1 + $0x388] sm:$0xff]
  %v151 = vld [vmem:[%s1 + $0x390] sm:$0xff]
  %v152 = vld [vmem:[%s1 + $0x398] sm:$0xff]
  %v153 = vld [vmem:[%s1 + $0x3a0] sm:$0xff]
  %v154 = vld [vmem:[%s1 + $0x3a8] sm:$0xff]
  %v155 = vld [vmem:[%s1 + $0x3b0] sm:$0xff]
  %v156 = vld [vmem:[%s1 + $0x3b8] sm:$0xff]
  %v157 = vld [vmem:[%s1 + $0x3c0] sm:$0xff]
  %v158 = vld [vmem:[%s1 + $0x3c8] sm:$0xff]
  %v159 = vld [vmem:[%s1 + $0x3d0] sm:$0xff]
  %v160 = vld [vmem:[%s1 + $0x3d8] sm:$0xff]
  %v161 = vld [vmem:[%s1 + $0x3e0] sm:$0xff]
  %v162 = vld [vmem:[%s1 + $0x3e8] sm:$0xff]
  %v163 = vld [vmem:[%s1 + $0x3f0] sm:$0xff]
  %v164 = vld [vmem:[%s1 + $0x3f8] sm:$0xff]
  %v165 = vld [vmem:[%s1 + $0x400] sm:$0xff]
  %v166 = vld [vmem:[%s1 + $0x408] sm:$0xff]
  %v167 = vld [vmem:[%s1 + $0x410] sm:$0xff]
  %v168 = vld [vmem:[%s1 + $0x418] sm:$0xff]
  %v169 = vld [vmem:[%s1 + $0x420] sm:$0xff]
  %v170 = vld [vmem:[%s1 + $0x428] sm:$0xff]
  %v171 = vld [vmem:[%s1 + $0x430] sm:$0xff]
  %v172 = vld [vmem:[%s1 + $0x438] sm:$0xff]
  %v173 = vld [vmem:[%s1 + $0x440] sm:$0xff]
  %v174 = vld [vmem:[%s1 + $0x448] sm:$0xff]
  %v175 = vld [vmem:[%s1 + $0x450] sm:$0xff]
  %v176 = vld [vmem:[%s1 + $0x458] sm:$0xff]
  %v177 = vld [vmem:[%s1 + $0x460] sm:$0xff]
  %v178 = vld [vmem:[%s1 + $0x468] sm:$0xff]
  %v179 = vld [vmem:[%s1 + $0x470] sm:$0xff]
  %v180 = vld [vmem:[%s1 + $0x478] sm:$0xff]
  %v181 = vld [vmem:[%s1 + $0x480] sm:$0xff]
  %v182 = vld [vmem:[%s1 + $0x488] sm:$0xff]
  %v183 = vld [vmem:[%s1 + $0x490] sm:$0xff]
  %v184 = vld [vmem:[%s1 + $0x498] sm:$0xff]
  %v185 = vld [vmem:[%s1 + $0x4a0] sm:$0xff]
  %v186 = vld [vmem:[%s1 + $0x4a8] sm:$0xff]
  %v187 = vld [vmem:[%s1 + $0x4b0] sm:$0xff]
  %v188 = vld [vmem:[%s1 + $0x4b8] sm:$0xff]
  %v189 = vld [vmem:[%s1 + $0x4c0] sm:$0xff]
  %v190 = vld [vmem:[%s1 + $0x4c8] sm:$0xff]
  %v191 = vld [vmem:[%s1 + $0x4d0] sm:$0xff]
  %v192 = vld [vmem:[%s1 + $0x4d8] sm:$0xff]
  %v193 = vld [vmem:[%s1 + $0x4e0] sm:$0xff]
  %v194 = vld [vmem:[%s1 + $0x4e8] sm:$0xff]
  %v195 = vld [vmem:[%s1 + $0x4f0] sm:$0xff]
  %v196 = vld [vmem:[%s1 + $0x4f8] sm:$0xff]
  %v197 = vld [vmem:[%s1 + $0x500] sm:$0xff]
  %v198 = vld [vmem:[%s1 + $0x508] sm:$0xff]
  %v199 = vld [vmem:[%s1 + $0x510] sm:$0xff]
  %v200 = vld [vmem:[%s1 + $0x518] sm:$0xff]
  %v201 = vld [vmem:[%s1 + $0x520] sm:$0xff]
  %v202 = vld [vmem:[%s1 + $0x528] sm:$0xff]
  %v203 = vld [vmem:[%s1 + $0x530] sm:$0xff]
  %v204 = vld [vmem:[%s1 + $0x538] sm:$0xff]
  %v205 = vld [vmem:[%s1 + $0x540] sm:$0xff]
  %v206 = vld [vmem:[%s1 + $0x548] sm:$0xff]
  %v207 = vld [vmem:[%s1 + $0x550] sm:$0xff]
  %v208 = vld [vmem:[%s1 + $0x558] sm:$0xff]
  %v209 = vld [vmem:[%s1 + $0x560] sm:$0xff]
  %v210 = vld [vmem:[%s1 + $0x568] sm:$0xff]
  %v211 = vld [vmem:[%s1 + $0x570] sm:$0xff]
  %v212 = vld [vmem:[%s1 + $0x578] sm:$0xff]
  %v213 = vld [vmem:[%s1 + $0x580] sm:$0xff]
  %v214 = vld [vmem:[%s1 + $0x588] sm:$0xff]
  %v215 = vld [vmem:[%s1 + $0x590] sm:$0xff]
  %v216 = vld [vmem:[%s1 + $0x598] sm:$0xff]
  %v217 = vld [vmem:[%s1 + $0x5a0] sm:$0xff]
  %v218 = vld [vmem:[%s1 + $0x5a8] sm:$0xff]
  %v219 = vld [vmem:[%s1 + $0x5b0] sm:$0xff]
  %v220 = vld [vmem:[%s1 + $0x5b8] sm:$0xff]
  %v221 = vld [vmem:[%s1 + $0x5c0] sm:$0xff]
  %v222 = vld [vmem:[%s1 + $0x5c8] sm:$0xff]
  %v223 = vld [vmem:[%s1 + $0x5d0] sm:$0xff]
  %v224 = vld [vmem:[%s1 + $0x5d8] sm:$0xff]
  %v225 = vld [vmem:[%s1 + $0x5e0] sm:$0xff]
  %v226 = vld [vmem:[%s1 + $0x5e8] sm:$0xff]
  %v227 = vld [vmem:[%s1 + $0x5f0] sm:$0xff]
  %v228 = vld [vmem:[%s1 + $0x5f8] sm:$0xff]
  %v229 = vld [vmem:[%s1 + $0x600] sm:$0xff]
  %v230 = vld [vmem:[%s1 + $0x608] sm:$0xff]
  %v231 = vld [vmem:[%s1 + $0x610] sm:$0xff]
  %v232 = vld [vmem:[%s1 + $0x618] sm:$0xff]
  %v233 = vld [vmem:[%s2] sm:$0xf]
  %v235 = vlaneseq
  %v236 = vshrl.u32 %v235, 7
  %v237 = vsub.s32 0, %v236
  %v238 = vrot.slane %v233, %v237
  %v239 = vlaneseq
  %v240 = vshrl.u32 %v239, 7
  %v241 = vsub.s32 1, %v240
  %v242 = vrot.slane %v233, %v241
  %v243 = vlaneseq
  %v244 = vshrl.u32 %v243, 7
  %v245 = vsub.s32 2, %v244
  %v246 = vrot.slane %v233, %v245
  %v247 = vlaneseq
  %v248 = vshrl.u32 %v247, 7
  %v249 = vsub.s32 3, %v248
  %v250 = vrot.slane %v233, %v249
  %v259 = vunpack.c.l.b16 %v33
  %v260 = vunpack.c.h.b16 %v33
  %v261 = vunpack.c.l.b16 %v34
  %v262 = vunpack.c.h.b16 %v34
  %v263 = vunpack.c.l.b16 %v35
  %v264 = vunpack.c.h.b16 %v35
  %v265 = vunpack.c.l.b16 %v36
  %v266 = vpack.c.b16 %v259, %v259
  %v267 = vpack.c.b16 %v260, %v260
  %v268 = vpack.c.b16 %v261, %v261
  %v269 = vpack.c.b16 %v262, %v262
  %v270 = vpack.c.b16 %v263, %v263
  %v271 = vpack.c.b16 %v264, %v264
  %v272 = vpack.c.b16 %v265, %v265
  %v475 = vunpack.c.l.b16 %v37
  %v476 = vunpack.c.h.b16 %v37
  %v477 = vunpack.c.l.b16 %v38
  %v478 = vunpack.c.h.b16 %v38
  %v479 = vunpack.c.l.b16 %v39
  %v480 = vunpack.c.h.b16 %v39
  %v481 = vunpack.c.l.b16 %v40
  %v482 = vunpack.c.h.b16 %v40
  %v483 = vunpack.c.l.b16 %v41
  %v484 = vunpack.c.h.b16 %v41
  %v485 = vunpack.c.l.b16 %v42
  %v486 = vunpack.c.h.b16 %v42
  %v487 = vunpack.c.l.b16 %v43
  %v488 = vunpack.c.h.b16 %v43
  %v489 = vunpack.c.l.b16 %v44
  %v490 = vunpack.c.h.b16 %v44
  %v491 = vunpack.c.l.b16 %v45
  %v492 = vunpack.c.h.b16 %v45
  %v493 = vunpack.c.l.b16 %v46
  %v494 = vunpack.c.h.b16 %v46
  %v495 = vunpack.c.l.b16 %v47
  %v496 = vunpack.c.h.b16 %v47
  %v497 = vunpack.c.l.b16 %v48
  %v498 = vunpack.c.h.b16 %v48
  %v499 = vunpack.c.l.b16 %v49
  %v500 = vunpack.c.h.b16 %v49
  %v501 = vunpack.c.l.b16 %v50
  %v502 = vunpack.c.h.b16 %v50
  %v503 = vunpack.c.l.b16 %v51
  %v504 = vunpack.c.h.b16 %v51
  %v505 = vunpack.c.l.b16 %v52
  %v506 = vunpack.c.h.b16 %v52
  %v507 = vunpack.c.l.b16 %v53
  %v508 = vunpack.c.h.b16 %v53
  %v509 = vunpack.c.l.b16 %v54
  %v510 = vunpack.c.h.b16 %v54
  %v511 = vunpack.c.l.b16 %v55
  %v512 = vunpack.c.h.b16 %v55
  %v513 = vunpack.c.l.b16 %v56
  %v514 = vunpack.c.h.b16 %v56
  %v515 = vunpack.c.l.b16 %v57
  %v516 = vunpack.c.h.b16 %v57
  %v517 = vunpack.c.l.b16 %v58
  %v518 = vunpack.c.h.b16 %v58
  %v519 = vunpack.c.l.b16 %v59
  %v520 = vunpack.c.h.b16 %v59
  %v521 = vunpack.c.l.b16 %v60
  %v522 = vunpack.c.h.b16 %v60
  %v523 = vunpack.c.l.b16 %v61
  %v524 = vunpack.c.h.b16 %v61
  %v525 = vunpack.c.l.b16 %v62
  %v526 = vunpack.c.h.b16 %v62
  %v527 = vunpack.c.l.b16 %v63
  %v528 = vunpack.c.h.b16 %v63
  %v529 = vunpack.c.l.b16 %v64
  %v530 = vunpack.c.h.b16 %v64
  %v531 = vunpack.c.l.b16 %v65
  %v532 = vunpack.c.h.b16 %v65
  %v533 = vunpack.c.l.b16 %v66
  %v534 = vunpack.c.h.b16 %v66
  %v535 = vunpack.c.l.b16 %v67
  %v536 = vunpack.c.h.b16 %v67
  %v537 = vunpack.c.l.b16 %v68
  %v538 = vunpack.c.h.b16 %v68
  %v539 = vunpack.c.l.b16 %v69
  %v540 = vunpack.c.h.b16 %v69
  %v541 = vunpack.c.l.b16 %v70
  %v542 = vunpack.c.h.b16 %v70
  %v543 = vunpack.c.l.b16 %v71
  %v544 = vunpack.c.h.b16 %v71
  %v545 = vunpack.c.l.b16 %v72
  %v546 = vunpack.c.h.b16 %v72
  %v547 = vunpack.c.l.b16 %v73
  %v548 = vunpack.c.h.b16 %v73
  %v549 = vunpack.c.l.b16 %v74
  %v550 = vunpack.c.h.b16 %v74
  %v551 = vunpack.c.l.b16 %v75
  %v552 = vunpack.c.h.b16 %v75
  %v553 = vunpack.c.l.b16 %v76
  %v554 = vunpack.c.h.b16 %v76
  %v555 = vunpack.c.l.b16 %v77
  %v556 = vunpack.c.h.b16 %v77
  %v557 = vunpack.c.l.b16 %v78
  %v558 = vunpack.c.h.b16 %v78
  %v559 = vunpack.c.l.b16 %v79
  %v560 = vunpack.c.h.b16 %v79
  %v561 = vunpack.c.l.b16 %v80
  %v562 = vunpack.c.h.b16 %v80
  %v563 = vunpack.c.l.b16 %v81
  %v564 = vunpack.c.h.b16 %v81
  %v565 = vunpack.c.l.b16 %v82
  %v566 = vunpack.c.h.b16 %v82
  %v567 = vunpack.c.l.b16 %v83
  %v568 = vunpack.c.h.b16 %v83
  %v569 = vunpack.c.l.b16 %v84
  %v570 = vunpack.c.h.b16 %v84
  %v571 = vunpack.c.l.b16 %v85
  %v572 = vunpack.c.h.b16 %v85
  %v573 = vunpack.c.l.b16 %v86
  %v574 = vunpack.c.h.b16 %v86
  %v575 = vunpack.c.l.b16 %v87
  %v576 = vunpack.c.h.b16 %v87
  %v577 = vunpack.c.l.b16 %v88
  %v578 = vunpack.c.h.b16 %v88
  %v579 = vunpack.c.l.b16 %v89
  %v580 = vunpack.c.h.b16 %v89
  %v581 = vunpack.c.l.b16 %v90
  %v582 = vunpack.c.h.b16 %v90
  %v583 = vunpack.c.l.b16 %v91
  %v584 = vunpack.c.h.b16 %v91
  %v585 = vunpack.c.l.b16 %v92
  %v586 = vunpack.c.h.b16 %v92
  %v587 = vunpack.c.l.b16 %v93
  %v588 = vunpack.c.h.b16 %v93
  %v589 = vunpack.c.l.b16 %v94
  %v590 = vunpack.c.h.b16 %v94
  %v591 = vunpack.c.l.b16 %v95
  %v592 = vunpack.c.h.b16 %v95
  %v593 = vunpack.c.l.b16 %v96
  %v594 = vunpack.c.h.b16 %v96
  %v595 = vunpack.c.l.b16 %v97
  %v596 = vunpack.c.h.b16 %v97
  %v597 = vunpack.c.l.b16 %v98
  %v598 = vunpack.c.h.b16 %v98
  %v599 = vunpack.c.l.b16 %v99
  %v600 = vunpack.c.h.b16 %v99
  %v601 = vunpack.c.l.b16 %v100
  %v602 = vunpack.c.h.b16 %v100
  %v603 = vunpack.c.l.b16 %v101
  %v604 = vunpack.c.h.b16 %v101
  %v605 = vunpack.c.l.b16 %v102
  %v606 = vunpack.c.h.b16 %v102
  %v607 = vunpack.c.l.b16 %v103
  %v608 = vunpack.c.h.b16 %v103
  %v609 = vunpack.c.l.b16 %v104
  %v610 = vunpack.c.h.b16 %v104
  %v611 = vunpack.c.l.b16 %v105
  %v612 = vunpack.c.h.b16 %v105
  %v613 = vunpack.c.l.b16 %v106
  %v614 = vunpack.c.h.b16 %v106
  %v615 = vunpack.c.l.b16 %v107
  %v616 = vunpack.c.h.b16 %v107
  %v617 = vunpack.c.l.b16 %v108
  %v618 = vunpack.c.h.b16 %v108
  %v619 = vunpack.c.l.b16 %v109
  %v620 = vunpack.c.h.b16 %v109
  %v621 = vunpack.c.l.b16 %v110
  %v622 = vunpack.c.h.b16 %v110
  %v623 = vunpack.c.l.b16 %v111
  %v624 = vunpack.c.h.b16 %v111
  %v625 = vunpack.c.l.b16 %v112
  %v626 = vunpack.c.h.b16 %v112
  %v627 = vunpack.c.l.b16 %v113
  %v628 = vunpack.c.h.b16 %v113
  %v629 = vunpack.c.l.b16 %v114
  %v630 = vunpack.c.h.b16 %v114
  %v631 = vunpack.c.l.b16 %v115
  %v632 = vunpack.c.h.b16 %v115
  %v633 = vunpack.c.l.b16 %v116
  %v634 = vunpack.c.h.b16 %v116
  %v635 = vunpack.c.l.b16 %v117
  %v636 = vunpack.c.h.b16 %v117
  %v637 = vunpack.c.l.b16 %v118
  %v638 = vunpack.c.h.b16 %v118
  %v639 = vunpack.c.l.b16 %v119
  %v640 = vunpack.c.h.b16 %v119
  %v641 = vunpack.c.l.b16 %v120
  %v642 = vunpack.c.h.b16 %v120
  %v643 = vunpack.c.l.b16 %v121
  %v644 = vunpack.c.h.b16 %v121
  %v645 = vunpack.c.l.b16 %v122
  %v646 = vunpack.c.h.b16 %v122
  %v647 = vunpack.c.l.b16 %v123
  %v648 = vunpack.c.h.b16 %v123
  %v649 = vunpack.c.l.b16 %v124
  %v650 = vunpack.c.h.b16 %v124
  %v651 = vunpack.c.l.b16 %v125
  %v652 = vunpack.c.h.b16 %v125
  %v653 = vunpack.c.l.b16 %v126
  %v654 = vunpack.c.h.b16 %v126
  %v655 = vunpack.c.l.b16 %v127
  %v656 = vunpack.c.h.b16 %v127
  %v657 = vunpack.c.l.b16 %v128
  %v658 = vunpack.c.h.b16 %v128
  %v659 = vunpack.c.l.b16 %v129
  %v660 = vunpack.c.h.b16 %v129
  %v661 = vunpack.c.l.b16 %v130
  %v662 = vunpack.c.h.b16 %v130
  %v663 = vunpack.c.l.b16 %v131
  %v664 = vunpack.c.h.b16 %v131
  %v665 = vunpack.c.l.b16 %v132
  %v666 = vunpack.c.h.b16 %v132
  %v667 = vunpack.c.l.b16 %v133
  %v668 = vunpack.c.h.b16 %v133
  %v669 = vunpack.c.l.b16 %v134
  %v670 = vunpack.c.h.b16 %v134
  %v671 = vunpack.c.l.b16 %v135
  %v672 = vunpack.c.h.b16 %v135
  %v673 = vunpack.c.l.b16 %v136
  %v674 = vunpack.c.h.b16 %v136
  %v675 = vunpack.c.l.b16 %v137
  %v676 = vunpack.c.h.b16 %v137
  %v677 = vunpack.c.l.b16 %v138
  %v678 = vunpack.c.h.b16 %v138
  %v679 = vunpack.c.l.b16 %v139
  %v680 = vunpack.c.h.b16 %v139
  %v681 = vunpack.c.l.b16 %v140
  %v682 = vunpack.c.h.b16 %v140
  %v683 = vunpack.c.l.b16 %v141
  %v684 = vunpack.c.h.b16 %v141
  %v685 = vunpack.c.l.b16 %v142
  %v686 = vunpack.c.h.b16 %v142
  %v687 = vunpack.c.l.b16 %v143
  %v688 = vunpack.c.h.b16 %v143
  %v689 = vunpack.c.l.b16 %v144
  %v690 = vunpack.c.h.b16 %v144
  %v691 = vunpack.c.l.b16 %v145
  %v692 = vunpack.c.h.b16 %v145
  %v693 = vunpack.c.l.b16 %v146
  %v694 = vunpack.c.h.b16 %v146
  %v695 = vunpack.c.l.b16 %v147
  %v696 = vunpack.c.h.b16 %v147
  %v697 = vunpack.c.l.b16 %v148
  %v698 = vunpack.c.h.b16 %v148
  %v699 = vunpack.c.l.b16 %v149
  %v700 = vunpack.c.h.b16 %v149
  %v701 = vunpack.c.l.b16 %v150
  %v702 = vunpack.c.h.b16 %v150
  %v703 = vunpack.c.l.b16 %v151
  %v704 = vunpack.c.h.b16 %v151
  %v705 = vunpack.c.l.b16 %v152
  %v706 = vunpack.c.h.b16 %v152
  %v707 = vunpack.c.l.b16 %v153
  %v708 = vunpack.c.h.b16 %v153
  %v709 = vunpack.c.l.b16 %v154
  %v710 = vunpack.c.h.b16 %v154
  %v711 = vunpack.c.l.b16 %v155
  %v712 = vunpack.c.h.b16 %v155
  %v713 = vunpack.c.l.b16 %v156
  %v714 = vunpack.c.h.b16 %v156
  %v715 = vunpack.c.l.b16 %v157
  %v716 = vunpack.c.h.b16 %v157
  %v717 = vunpack.c.l.b16 %v158
  %v718 = vunpack.c.h.b16 %v158
  %v719 = vunpack.c.l.b16 %v159
  %v720 = vunpack.c.h.b16 %v159
  %v721 = vunpack.c.l.b16 %v160
  %v722 = vunpack.c.h.b16 %v160
  %v723 = vunpack.c.l.b16 %v161
  %v724 = vunpack.c.h.b16 %v161
  %v725 = vunpack.c.l.b16 %v162
  %v726 = vunpack.c.h.b16 %v162
  %v727 = vunpack.c.l.b16 %v163
  %v728 = vunpack.c.h.b16 %v163
  %v729 = vunpack.c.l.b16 %v164
  %v730 = vunpack.c.h.b16 %v164
  %v731 = vunpack.c.l.b16 %v165
  %v732 = vunpack.c.h.b16 %v165
  %v733 = vunpack.c.l.b16 %v166
  %v734 = vunpack.c.h.b16 %v166
  %v735 = vunpack.c.l.b16 %v167
  %v736 = vunpack.c.h.b16 %v167
  %v737 = vunpack.c.l.b16 %v168
  %v738 = vunpack.c.h.b16 %v168
  %v739 = vunpack.c.l.b16 %v169
  %v740 = vunpack.c.h.b16 %v169
  %v741 = vunpack.c.l.b16 %v170
  %v742 = vunpack.c.h.b16 %v170
  %v743 = vunpack.c.l.b16 %v171
  %v744 = vunpack.c.h.b16 %v171
  %v745 = vunpack.c.l.b16 %v172
  %v746 = vunpack.c.h.b16 %v172
  %v747 = vunpack.c.l.b16 %v173
  %v748 = vunpack.c.h.b16 %v173
  %v749 = vunpack.c.l.b16 %v174
  %v750 = vunpack.c.h.b16 %v174
  %v751 = vunpack.c.l.b16 %v175
  %v752 = vunpack.c.h.b16 %v175
  %v753 = vunpack.c.l.b16 %v176
  %v754 = vunpack.c.h.b16 %v176
  %v755 = vunpack.c.l.b16 %v177
  %v756 = vunpack.c.h.b16 %v177
  %v757 = vunpack.c.l.b16 %v178
  %v758 = vunpack.c.h.b16 %v178
  %v759 = vunpack.c.l.b16 %v179
  %v760 = vunpack.c.h.b16 %v179
  %v761 = vunpack.c.l.b16 %v180
  %v762 = vunpack.c.h.b16 %v180
  %v763 = vunpack.c.l.b16 %v181
  %v764 = vunpack.c.h.b16 %v181
  %v765 = vunpack.c.l.b16 %v182
  %v766 = vunpack.c.h.b16 %v182
  %v767 = vunpack.c.l.b16 %v183
  %v768 = vunpack.c.h.b16 %v183
  %v769 = vunpack.c.l.b16 %v184
  %v770 = vunpack.c.h.b16 %v184
  %v771 = vunpack.c.l.b16 %v185
  %v772 = vunpack.c.h.b16 %v185
  %v773 = vunpack.c.l.b16 %v186
  %v774 = vunpack.c.h.b16 %v186
  %v775 = vunpack.c.l.b16 %v187
  %v776 = vunpack.c.h.b16 %v187
  %v777 = vunpack.c.l.b16 %v188
  %v778 = vunpack.c.h.b16 %v188
  %v779 = vunpack.c.l.b16 %v189
  %v780 = vunpack.c.h.b16 %v189
  %v781 = vunpack.c.l.b16 %v190
  %v782 = vunpack.c.h.b16 %v190
  %v783 = vunpack.c.l.b16 %v191
  %v784 = vunpack.c.h.b16 %v191
  %v785 = vunpack.c.l.b16 %v192
  %v786 = vunpack.c.h.b16 %v192
  %v787 = vunpack.c.l.b16 %v193
  %v788 = vunpack.c.h.b16 %v193
  %v789 = vunpack.c.l.b16 %v194
  %v790 = vunpack.c.h.b16 %v194
  %v791 = vunpack.c.l.b16 %v195
  %v792 = vunpack.c.h.b16 %v195
  %v793 = vunpack.c.l.b16 %v196
  %v794 = vunpack.c.h.b16 %v196
  %v795 = vunpack.c.l.b16 %v197
  %v796 = vunpack.c.h.b16 %v197
  %v797 = vunpack.c.l.b16 %v198
  %v798 = vunpack.c.h.b16 %v198
  %v799 = vunpack.c.l.b16 %v199
  %v800 = vunpack.c.h.b16 %v199
  %v801 = vunpack.c.l.b16 %v200
  %v802 = vunpack.c.h.b16 %v200
  %v803 = vunpack.c.l.b16 %v201
  %v804 = vunpack.c.h.b16 %v201
  %v805 = vunpack.c.l.b16 %v202
  %v806 = vunpack.c.h.b16 %v202
  %v807 = vunpack.c.l.b16 %v203
  %v808 = vunpack.c.h.b16 %v203
  %v809 = vunpack.c.l.b16 %v204
  %v810 = vunpack.c.h.b16 %v204
  %v811 = vunpack.c.l.b16 %v205
  %v812 = vunpack.c.h.b16 %v205
  %v813 = vunpack.c.l.b16 %v206
  %v814 = vunpack.c.h.b16 %v206
  %v815 = vunpack.c.l.b16 %v207
  %v816 = vunpack.c.h.b16 %v207
  %v817 = vunpack.c.l.b16 %v208
  %v818 = vunpack.c.h.b16 %v208
  %v819 = vunpack.c.l.b16 %v209
  %v820 = vunpack.c.h.b16 %v209
  %v821 = vunpack.c.l.b16 %v210
  %v822 = vunpack.c.h.b16 %v210
  %v823 = vunpack.c.l.b16 %v211
  %v824 = vunpack.c.h.b16 %v211
  %v825 = vunpack.c.l.b16 %v212
  %v826 = vunpack.c.h.b16 %v212
  %v827 = vunpack.c.l.b16 %v213
  %v828 = vunpack.c.h.b16 %v213
  %v829 = vunpack.c.l.b16 %v214
  %v830 = vunpack.c.h.b16 %v214
  %v831 = vunpack.c.l.b16 %v215
  %v832 = vunpack.c.h.b16 %v215
  %v833 = vunpack.c.l.b16 %v216
  %v834 = vunpack.c.h.b16 %v216
  %v835 = vunpack.c.l.b16 %v217
  %v836 = vunpack.c.h.b16 %v217
  %v837 = vunpack.c.l.b16 %v218
  %v838 = vunpack.c.h.b16 %v218
  %v839 = vunpack.c.l.b16 %v219
  %v840 = vunpack.c.h.b16 %v219
  %v841 = vunpack.c.l.b16 %v220
  %v842 = vunpack.c.h.b16 %v220
  %v843 = vunpack.c.l.b16 %v221
  %v844 = vunpack.c.h.b16 %v221
  %v845 = vunpack.c.l.b16 %v222
  %v846 = vunpack.c.h.b16 %v222
  %v847 = vunpack.c.l.b16 %v223
  %v848 = vunpack.c.h.b16 %v223
  %v849 = vunpack.c.l.b16 %v224
  %v850 = vunpack.c.h.b16 %v224
  %v851 = vunpack.c.l.b16 %v225
  %v852 = vunpack.c.h.b16 %v225
  %v853 = vunpack.c.l.b16 %v226
  %v854 = vunpack.c.h.b16 %v226
  %v855 = vunpack.c.l.b16 %v227
  %v856 = vunpack.c.h.b16 %v227
  %v857 = vunpack.c.l.b16 %v228
  %v858 = vunpack.c.h.b16 %v228
  %v859 = vunpack.c.l.b16 %v229
  %v860 = vunpack.c.h.b16 %v229
  %v861 = vunpack.c.l.b16 %v230
  %v862 = vunpack.c.h.b16 %v230
  %v863 = vunpack.c.l.b16 %v231
  %v864 = vunpack.c.h.b16 %v231
  %v865 = vunpack.c.l.b16 %v232
  %v866 = vunpack.c.h.b16 %v232
  %v867 = vpack.c.b16 %v479, %v475
  %v868 = vpack.c.b16 %v480, %v476
  %v869 = vpack.c.b16 %v481, %v477
  %v870 = vpack.c.b16 %v482, %v478
  %v871 = vpack.c.b16 %v487, %v483
  %v872 = vpack.c.b16 %v488, %v484
  %v873 = vpack.c.b16 %v489, %v485
  %v874 = vpack.c.b16 %v490, %v486
  %v875 = vpack.c.b16 %v495, %v491
  %v876 = vpack.c.b16 %v496, %v492
  %v877 = vpack.c.b16 %v497, %v493
  %v878 = vpack.c.b16 %v498, %v494
  %v879 = vpack.c.b16 %v503, %v499
  %v880 = vpack.c.b16 %v504, %v500
  %v881 = vpack.c.b16 %v505, %v501
  %v882 = vpack.c.b16 %v506, %v502
  %v883 = vpack.c.b16 %v511, %v507
  %v884 = vpack.c.b16 %v512, %v508
  %v885 = vpack.c.b16 %v513, %v509
  %v886 = vpack.c.b16 %v514, %v510
  %v887 = vpack.c.b16 %v519, %v515
  %v888 = vpack.c.b16 %v520, %v516
  %v889 = vpack.c.b16 %v521, %v517
  %v890 = vpack.c.b16 %v522, %v518
  %v891 = vpack.c.b16 %v527, %v523
  %v892 = vpack.c.b16 %v528, %v524
  %v893 = vpack.c.b16 %v529, %v525
  %v894 = vpack.c.b16 %v530, %v526
  %v895 = vpack.c.b16 %v535, %v531
  %v896 = vpack.c.b16 %v536, %v532
  %v897 = vpack.c.b16 %v537, %v533
  %v898 = vpack.c.b16 %v538, %v534
  %v899 = vpack.c.b16 %v543, %v539
  %v900 = vpack.c.b16 %v544, %v540
  %v901 = vpack.c.b16 %v545, %v541
  %v902 = vpack.c.b16 %v546, %v542
  %v903 = vpack.c.b16 %v551, %v547
  %v904 = vpack.c.b16 %v552, %v548
  %v905 = vpack.c.b16 %v553, %v549
  %v906 = vpack.c.b16 %v554, %v550
  %v907 = vpack.c.b16 %v559, %v555
  %v908 = vpack.c.b16 %v560, %v556
  %v909 = vpack.c.b16 %v561, %v557
  %v910 = vpack.c.b16 %v562, %v558
  %v911 = vpack.c.b16 %v567, %v563
  %v912 = vpack.c.b16 %v568, %v564
  %v913 = vpack.c.b16 %v569, %v565
  %v914 = vpack.c.b16 %v570, %v566
  %v915 = vpack.c.b16 %v575, %v571
  %v916 = vpack.c.b16 %v576, %v572
  %v917 = vpack.c.b16 %v577, %v573
  %v918 = vpack.c.b16 %v578, %v574
  %v919 = vpack.c.b16 %v583, %v579
  %v920 = vpack.c.b16 %v584, %v580
  %v921 = vpack.c.b16 %v585, %v581
  %v922 = vpack.c.b16 %v586, %v582
  %v923 = vpack.c.b16 %v591, %v587
  %v924 = vpack.c.b16 %v592, %v588
  %v925 = vpack.c.b16 %v593, %v589
  %v926 = vpack.c.b16 %v594, %v590
  %v927 = vpack.c.b16 %v599, %v595
  %v928 = vpack.c.b16 %v600, %v596
  %v929 = vpack.c.b16 %v601, %v597
  %v930 = vpack.c.b16 %v602, %v598
  %v931 = vpack.c.b16 %v607, %v603
  %v932 = vpack.c.b16 %v608, %v604
  %v933 = vpack.c.b16 %v609, %v605
  %v934 = vpack.c.b16 %v610, %v606
  %v935 = vpack.c.b16 %v615, %v611
  %v936 = vpack.c.b16 %v616, %v612
  %v937 = vpack.c.b16 %v617, %v613
  %v938 = vpack.c.b16 %v618, %v614
  %v939 = vpack.c.b16 %v623, %v619
  %v940 = vpack.c.b16 %v624, %v620
  %v941 = vpack.c.b16 %v625, %v621
  %v942 = vpack.c.b16 %v626, %v622
  %v943 = vpack.c.b16 %v631, %v627
  %v944 = vpack.c.b16 %v632, %v628
  %v945 = vpack.c.b16 %v633, %v629
  %v946 = vpack.c.b16 %v634, %v630
  %v947 = vpack.c.b16 %v639, %v635
  %v948 = vpack.c.b16 %v640, %v636
  %v949 = vpack.c.b16 %v641, %v637
  %v950 = vpack.c.b16 %v642, %v638
  %v951 = vpack.c.b16 %v647, %v643
  %v952 = vpack.c.b16 %v648, %v644
  %v953 = vpack.c.b16 %v649, %v645
  %v954 = vpack.c.b16 %v650, %v646
  %v955 = vpack.c.b16 %v655, %v651
  %v956 = vpack.c.b16 %v656, %v652
  %v957 = vpack.c.b16 %v657, %v653
  %v958 = vpack.c.b16 %v658, %v654
  %v959 = vpack.c.b16 %v663, %v659
  %v960 = vpack.c.b16 %v664, %v660
  %v961 = vpack.c.b16 %v665, %v661
  %v962 = vpack.c.b16 %v666, %v662
  %v963 = vpack.c.b16 %v671, %v667
  %v964 = vpack.c.b16 %v672, %v668
  %v965 = vpack.c.b16 %v673, %v669
  %v966 = vpack.c.b16 %v674, %v670
  %v967 = vpack.c.b16 %v679, %v675
  %v968 = vpack.c.b16 %v680, %v676
  %v969 = vpack.c.b16 %v681, %v677
  %v970 = vpack.c.b16 %v682, %v678
  %v971 = vpack.c.b16 %v687, %v683
  %v972 = vpack.c.b16 %v688, %v684
  %v973 = vpack.c.b16 %v689, %v685
  %v974 = vpack.c.b16 %v690, %v686
  %v975 = vpack.c.b16 %v695, %v691
  %v976 = vpack.c.b16 %v696, %v692
  %v977 = vpack.c.b16 %v697, %v693
  %v978 = vpack.c.b16 %v698, %v694
  %v979 = vpack.c.b16 %v703, %v699
  %v980 = vpack.c.b16 %v704, %v700
  %v981 = vpack.c.b16 %v705, %v701
  %v982 = vpack.c.b16 %v706, %v702
  %v983 = vpack.c.b16 %v711, %v707
  %v984 = vpack.c.b16 %v712, %v708
  %v985 = vpack.c.b16 %v713, %v709
  %v986 = vpack.c.b16 %v714, %v710
  %v987 = vpack.c.b16 %v719, %v715
  %v988 = vpack.c.b16 %v720, %v716
  %v989 = vpack.c.b16 %v721, %v717
  %v990 = vpack.c.b16 %v722, %v718
  %v991 = vpack.c.b16 %v727, %v723
  %v992 = vpack.c.b16 %v728, %v724
  %v993 = vpack.c.b16 %v729, %v725
  %v994 = vpack.c.b16 %v730, %v726
  %v995 = vpack.c.b16 %v735, %v731
  %v996 = vpack.c.b16 %v736, %v732
  %v997 = vpack.c.b16 %v737, %v733
  %v998 = vpack.c.b16 %v738, %v734
  %v999 = vpack.c.b16 %v743, %v739
  %v1000 = vpack.c.b16 %v744, %v740
  %v1001 = vpack.c.b16 %v745, %v741
  %v1002 = vpack.c.b16 %v746, %v742
  %v1003 = vpack.c.b16 %v751, %v747
  %v1004 = vpack.c.b16 %v752, %v748
  %v1005 = vpack.c.b16 %v753, %v749
  %v1006 = vpack.c.b16 %v754, %v750
  %v1007 = vpack.c.b16 %v759, %v755
  %v1008 = vpack.c.b16 %v760, %v756
  %v1009 = vpack.c.b16 %v761, %v757
  %v1010 = vpack.c.b16 %v762, %v758
  %v1011 = vpack.c.b16 %v767, %v763
  %v1012 = vpack.c.b16 %v768, %v764
  %v1013 = vpack.c.b16 %v769, %v765
  %v1014 = vpack.c.b16 %v770, %v766
  %v1015 = vpack.c.b16 %v775, %v771
  %v1016 = vpack.c.b16 %v776, %v772
  %v1017 = vpack.c.b16 %v777, %v773
  %v1018 = vpack.c.b16 %v778, %v774
  %v1019 = vpack.c.b16 %v783, %v779
  %v1020 = vpack.c.b16 %v784, %v780
  %v1021 = vpack.c.b16 %v785, %v781
  %v1022 = vpack.c.b16 %v786, %v782
  %v1023 = vpack.c.b16 %v791, %v787
  %v1024 = vpack.c.b16 %v792, %v788
  %v1025 = vpack.c.b16 %v793, %v789
  %v1026 = vpack.c.b16 %v794, %v790
  %v1027 = vpack.c.b16 %v799, %v795
  %v1028 = vpack.c.b16 %v800, %v796
  %v1029 = vpack.c.b16 %v801, %v797
  %v1030 = vpack.c.b16 %v802, %v798
  %v1031 = vpack.c.b16 %v807, %v803
  %v1032 = vpack.c.b16 %v808, %v804
  %v1033 = vpack.c.b16 %v809, %v805
  %v1034 = vpack.c.b16 %v810, %v806
  %v1035 = vpack.c.b16 %v815, %v811
  %v1036 = vpack.c.b16 %v816, %v812
  %v1037 = vpack.c.b16 %v817, %v813
  %v1038 = vpack.c.b16 %v818, %v814
  %v1039 = vpack.c.b16 %v823, %v819
  %v1040 = vpack.c.b16 %v824, %v820
  %v1041 = vpack.c.b16 %v825, %v821
  %v1042 = vpack.c.b16 %v826, %v822
  %v1043 = vpack.c.b16 %v831, %v827
  %v1044 = vpack.c.b16 %v832, %v828
  %v1045 = vpack.c.b16 %v833, %v829
  %v1046 = vpack.c.b16 %v834, %v830
  %v1047 = vpack.c.b16 %v839, %v835
  %v1048 = vpack.c.b16 %v840, %v836
  %v1049 = vpack.c.b16 %v841, %v837
  %v1050 = vpack.c.b16 %v842, %v838
  %v1051 = vpack.c.b16 %v847, %v843
  %v1052 = vpack.c.b16 %v848, %v844
  %v1053 = vpack.c.b16 %v849, %v845
  %v1054 = vpack.c.b16 %v850, %v846
  %v1055 = vpack.c.b16 %v855, %v851
  %v1056 = vpack.c.b16 %v856, %v852
  %v1057 = vpack.c.b16 %v857, %v853
  %v1058 = vpack.c.b16 %v858, %v854
  %v1059 = vpack.c.b16 %v863, %v859
  %v1060 = vpack.c.b16 %v864, %v860
  %v1061 = vpack.c.b16 %v865, %v861
  %v1062 = vpack.c.b16 %v866, %v862
  %vm1259 = vcmask 130048
  %v1261 = vsel %vm1259, %v272, 0
  %1263 = vmatprep.subr.bf16.mxu0 %v896
  %1264 = vmatpush1.bf16.msra.mxu0 %v895
  %1265 = vmatprep.subr.bf16.mxu0 %v892
  %1266 = vmatpush1.bf16.msra.mxu0 %v891
  %1267 = vmatprep.subr.bf16.mxu0 %v888
  %1268 = vmatpush1.bf16.msra.mxu0 %v887
  %1269 = vmatprep.subr.bf16.mxu0 %v884
  %1270 = vmatpush1.bf16.msra.mxu0 %v883
  %1271 = vmatprep.subr.bf16.mxu0 %v880
  %1272 = vmatpush1.bf16.msra.mxu0 %v879
  %1273 = vmatprep.subr.bf16.mxu0 %v876
  %1274 = vmatpush1.bf16.msra.mxu0 %v875
  %1275 = vmatprep.subr.bf16.mxu0 %v872
  %1276 = vmatpush1.bf16.msra.mxu0 %v871
  %1277 = vmatprep.subr.bf16.mxu0 %v868
  %1278 = vmatpush1.bf16.msra.mxu0 %v867
  %1279 = vmatprep.subr.bf16.mxu0 %v928
  %1280 = vmatpush2.bf16.msra.mxu0 %v927
  %1281 = vmatprep.subr.bf16.mxu0 %v924
  %1282 = vmatpush2.bf16.msra.mxu0 %v923
  %1283 = vmatprep.subr.bf16.mxu0 %v920
  %1284 = vmatpush2.bf16.msra.mxu0 %v919
  %1285 = vmatprep.subr.bf16.mxu0 %v916
  %1286 = vmatpush2.bf16.msra.mxu0 %v915
  %1287 = vmatprep.subr.bf16.mxu0 %v912
  %1288 = vmatpush2.bf16.msra.mxu0 %v911
  %1289 = vmatprep.subr.bf16.mxu0 %v908
  %1290 = vmatpush2.bf16.msra.mxu0 %v907
  %1291 = vmatprep.subr.bf16.mxu0 %v904
  %1292 = vmatpush2.bf16.msra.mxu0 %v903
  %1293 = vmatprep.subr.bf16.mxu0 %v900
  %1294 = vmatpush2.bf16.msra.mxu0 %v899
  %1295 = vmatprep.mubr.bf16.mxu0 %v267
  %1296 = vmatmul.mubr.bf16.gmra.mxu0 %v266
  %v1297 = vpop.f32.mrf.mxu0
  %v1298 = vadd.f32 %v238, %v1297
  %v1299 = vpop.f32.mrf.mxu0
  %v1300 = vadd.f32 %v242, %v1299
  %v1301 = vpop.f32.mrf.mxu0
  %v1302 = vpop.f32.mrf.mxu0
  %1303 = vdwg.mxu0
  %1304 = vmatprep.subr.bf16.mxu0 %v960
  %1305 = vmatpush1.bf16.msra.mxu0 %v959
  %1306 = vmatprep.subr.bf16.mxu0 %v956
  %1307 = vmatpush1.bf16.msra.mxu0 %v955
  %1308 = vmatprep.subr.bf16.mxu0 %v952
  %1309 = vmatpush1.bf16.msra.mxu0 %v951
  %1310 = vmatprep.subr.bf16.mxu0 %v948
  %1311 = vmatpush1.bf16.msra.mxu0 %v947
  %1312 = vmatprep.subr.bf16.mxu0 %v944
  %1313 = vmatpush1.bf16.msra.mxu0 %v943
  %1314 = vmatprep.subr.bf16.mxu0 %v940
  %1315 = vmatpush1.bf16.msra.mxu0 %v939
  %1316 = vmatprep.subr.bf16.mxu0 %v936
  %1317 = vmatpush1.bf16.msra.mxu0 %v935
  %1318 = vmatprep.subr.bf16.mxu0 %v932
  %1319 = vmatpush1.bf16.msra.mxu0 %v931
  %1320 = vmatprep.subr.bf16.mxu0 %v992
  %1321 = vmatpush2.bf16.msra.mxu0 %v991
  %1322 = vmatprep.subr.bf16.mxu0 %v988
  %1323 = vmatpush2.bf16.msra.mxu0 %v987
  %1324 = vmatprep.subr.bf16.mxu0 %v984
  %1325 = vmatpush2.bf16.msra.mxu0 %v983
  %1326 = vmatprep.subr.bf16.mxu0 %v980
  %1327 = vmatpush2.bf16.msra.mxu0 %v979
  %1328 = vmatprep.subr.bf16.mxu0 %v976
  %1329 = vmatpush2.bf16.msra.mxu0 %v975
  %1330 = vmatprep.subr.bf16.mxu0 %v972
  %1331 = vmatpush2.bf16.msra.mxu0 %v971
  %1332 = vmatprep.subr.bf16.mxu0 %v968
  %1333 = vmatpush2.bf16.msra.mxu0 %v967
  %1334 = vmatprep.subr.bf16.mxu0 %v964
  %1335 = vmatpush2.bf16.msra.mxu0 %v963
  %1336 = vmatprep.mubr.bf16.mxu0 %v269
  %1337 = vmatmul.mubr.bf16.gmra.mxu0 %v268
  %v1338 = vpop.f32.mrf.mxu0
  %v1339 = vadd.f32 %v1298, %v1338
  %v1340 = vpop.f32.mrf.mxu0
  %v1341 = vadd.f32 %v1300, %v1340
  %v1342 = vpop.f32.mrf.mxu0
  %v1343 = vpop.f32.mrf.mxu0
  %1344 = vdwg.mxu0
  %1345 = vmatprep.subr.bf16.mxu0 %v1024
  %1346 = vmatpush1.bf16.msra.mxu0 %v1023
  %1347 = vmatprep.subr.bf16.mxu0 %v1020
  %1348 = vmatpush1.bf16.msra.mxu0 %v1019
  %1349 = vmatprep.subr.bf16.mxu0 %v1016
  %1350 = vmatpush1.bf16.msra.mxu0 %v1015
  %1351 = vmatprep.subr.bf16.mxu0 %v1012
  %1352 = vmatpush1.bf16.msra.mxu0 %v1011
  %1353 = vmatprep.subr.bf16.mxu0 %v1008
  %1354 = vmatpush1.bf16.msra.mxu0 %v1007
  %1355 = vmatprep.subr.bf16.mxu0 %v1004
  %1356 = vmatpush1.bf16.msra.mxu0 %v1003
  %1357 = vmatprep.subr.bf16.mxu0 %v1000
  %1358 = vmatpush1.bf16.msra.mxu0 %v999
  %1359 = vmatprep.subr.bf16.mxu0 %v996
  %1360 = vmatpush1.bf16.msra.mxu0 %v995
  %1361 = vmatprep.subr.bf16.mxu0 %v1056
  %1362 = vmatpush2.bf16.msra.mxu0 %v1055
  %1363 = vmatprep.subr.bf16.mxu0 %v1052
  %1364 = vmatpush2.bf16.msra.mxu0 %v1051
  %1365 = vmatprep.subr.bf16.mxu0 %v1048
  %1366 = vmatpush2.bf16.msra.mxu0 %v1047
  %1367 = vmatprep.subr.bf16.mxu0 %v1044
  %1368 = vmatpush2.bf16.msra.mxu0 %v1043
  %1369 = vmatprep.subr.bf16.mxu0 %v1040
  %1370 = vmatpush2.bf16.msra.mxu0 %v1039
  %1371 = vmatprep.subr.bf16.mxu0 %v1036
  %1372 = vmatpush2.bf16.msra.mxu0 %v1035
  %1373 = vmatprep.subr.bf16.mxu0 %v1032
  %1374 = vmatpush2.bf16.msra.mxu0 %v1031
  %1375 = vmatprep.subr.bf16.mxu0 %v1028
  %1376 = vmatpush2.bf16.msra.mxu0 %v1027
  %1377 = vmatprep.mubr.bf16.mxu0 %v271
  %1378 = vmatmul.mubr.bf16.gmra.mxu0 %v270
  %v1379 = vpop.f32.mrf.mxu0
  %v1380 = vadd.f32 %v1339, %v1379
  %v1381 = vpop.f32.mrf.mxu0
  %v1382 = vadd.f32 %v1341, %v1381
  %v1383 = vpop.f32.mrf.mxu0
  %v1384 = vpop.f32.mrf.mxu0
  %1385 = vdwg.mxu0
  %1386 = vmatprep.subr.bf16.mxu0 0
  %1387 = vmatpush1.bf16.msra.mxu0 0
  %1388 = vmatprep.subr.bf16.mxu0 0
  %1389 = vmatpush1.bf16.msra.mxu0 0
  %1390 = vmatprep.subr.bf16.mxu0 0
  %1391 = vmatpush1.bf16.msra.mxu0 0
  %1392 = vmatprep.subr.bf16.mxu0 0
  %1393 = vmatpush1.bf16.msra.mxu0 0
  %1394 = vmatprep.subr.bf16.mxu0 0
  %1395 = vmatpush1.bf16.msra.mxu0 0
  %1396 = vmatprep.subr.bf16.mxu0 0
  %1397 = vmatpush1.bf16.msra.mxu0 0
  %1398 = vmatprep.subr.bf16.mxu0 0
  %1399 = vmatpush1.bf16.msra.mxu0 0
  %1400 = vmatprep.subr.bf16.mxu0 %v1060
  %1401 = vmatpush1.bf16.msra.mxu0 %v1059
  %1402 = vmatprep.subr.bf16.mxu0 0
  %1403 = vmatpush2.bf16.msra.mxu0 0
  %1404 = vmatprep.subr.bf16.mxu0 0
  %1405 = vmatpush2.bf16.msra.mxu0 0
  %1406 = vmatprep.subr.bf16.mxu0 0
  %1407 = vmatpush2.bf16.msra.mxu0 0
  %1408 = vmatprep.subr.bf16.mxu0 0
  %1409 = vmatpush2.bf16.msra.mxu0 0
  %1410 = vmatprep.subr.bf16.mxu0 0
  %1411 = vmatpush2.bf16.msra.mxu0 0
  %1412 = vmatprep.subr.bf16.mxu0 0
  %1413 = vmatpush2.bf16.msra.mxu0 0
  %1414 = vmatprep.subr.bf16.mxu0 0
  %1415 = vmatpush2.bf16.msra.mxu0 0
  %1416 = vmatprep.subr.bf16.mxu0 0
  %1417 = vmatpush2.bf16.msra.mxu0 0
  %1418 = vmatprep.mubr.bf16.mxu0 0
  %1419 = vmatmul.mubr.bf16.gmra.mxu0 %v1261
  %v1420 = vpop.f32.mrf.mxu0
  %v1421 = vadd.f32 %v1380, %v1420
  %v1422 = vpop.f32.mrf.mxu0
  %v1423 = vadd.f32 %v1382, %v1422
  %v1424 = vpop.f32.mrf.mxu0
  %v1425 = vpop.f32.mrf.mxu0
  %1426 = vdwg.mxu0
  %1427 = vmatprep.subr.bf16.mxu0 %v898
  %1428 = vmatpush1.bf16.msra.mxu0 %v897
  %1429 = vmatprep.subr.bf16.mxu0 %v894
  %1430 = vmatpush1.bf16.msra.mxu0 %v893
  %1431 = vmatprep.subr.bf16.mxu0 %v890
  %1432 = vmatpush1.bf16.msra.mxu0 %v889
  %1433 = vmatprep.subr.bf16.mxu0 %v886
  %1434 = vmatpush1.bf16.msra.mxu0 %v885
  %1435 = vmatprep.subr.bf16.mxu0 %v882
  %1436 = vmatpush1.bf16.msra.mxu0 %v881
  %1437 = vmatprep.subr.bf16.mxu0 %v878
  %1438 = vmatpush1.bf16.msra.mxu0 %v877
  %1439 = vmatprep.subr.bf16.mxu0 %v874
  %1440 = vmatpush1.bf16.msra.mxu0 %v873
  %1441 = vmatprep.subr.bf16.mxu0 %v870
  %1442 = vmatpush1.bf16.msra.mxu0 %v869
  %1443 = vmatprep.subr.bf16.mxu0 %v930
  %1444 = vmatpush2.bf16.msra.mxu0 %v929
  %1445 = vmatprep.subr.bf16.mxu0 %v926
  %1446 = vmatpush2.bf16.msra.mxu0 %v925
  %1447 = vmatprep.subr.bf16.mxu0 %v922
  %1448 = vmatpush2.bf16.msra.mxu0 %v921
  %1449 = vmatprep.subr.bf16.mxu0 %v918
  %1450 = vmatpush2.bf16.msra.mxu0 %v917
  %1451 = vmatprep.subr.bf16.mxu0 %v914
  %1452 = vmatpush2.bf16.msra.mxu0 %v913
  %1453 = vmatprep.subr.bf16.mxu0 %v910
  %1454 = vmatpush2.bf16.msra.mxu0 %v909
  %1455 = vmatprep.subr.bf16.mxu0 %v906
  %1456 = vmatpush2.bf16.msra.mxu0 %v905
  %1457 = vmatprep.subr.bf16.mxu0 %v902
  %1458 = vmatpush2.bf16.msra.mxu0 %v901
  %1459 = vmatprep.mubr.bf16.mxu0 %v267
  %1460 = vmatmul.mubr.bf16.gmra.mxu0 %v266
  %v1461 = vpop.f32.mrf.mxu0
  %v1462 = vadd.f32 %v246, %v1461
  %v1463 = vpop.f32.mrf.mxu0
  %v1464 = vadd.f32 %v250, %v1463
  %v1465 = vpop.f32.mrf.mxu0
  %v1466 = vpop.f32.mrf.mxu0
  %1467 = vdwg.mxu0
  %1468 = vmatprep.subr.bf16.mxu0 %v962
  %1469 = vmatpush1.bf16.msra.mxu0 %v961
  %1470 = vmatprep.subr.bf16.mxu0 %v958
  %1471 = vmatpush1.bf16.msra.mxu0 %v957
  %1472 = vmatprep.subr.bf16.mxu0 %v954
  %1473 = vmatpush1.bf16.msra.mxu0 %v953
  %1474 = vmatprep.subr.bf16.mxu0 %v950
  %1475 = vmatpush1.bf16.msra.mxu0 %v949
  %1476 = vmatprep.subr.bf16.mxu0 %v946
  %1477 = vmatpush1.bf16.msra.mxu0 %v945
  %1478 = vmatprep.subr.bf16.mxu0 %v942
  %1479 = vmatpush1.bf16.msra.mxu0 %v941
  %1480 = vmatprep.subr.bf16.mxu0 %v938
  %1481 = vmatpush1.bf16.msra.mxu0 %v937
  %1482 = vmatprep.subr.bf16.mxu0 %v934
  %1483 = vmatpush1.bf16.msra.mxu0 %v933
  %1484 = vmatprep.subr.bf16.mxu0 %v994
  %1485 = vmatpush2.bf16.msra.mxu0 %v993
  %1486 = vmatprep.subr.bf16.mxu0 %v990
  %1487 = vmatpush2.bf16.msra.mxu0 %v989
  %1488 = vmatprep.subr.bf16.mxu0 %v986
  %1489 = vmatpush2.bf16.msra.mxu0 %v985
  %1490 = vmatprep.subr.bf16.mxu0 %v982
  %1491 = vmatpush2.bf16.msra.mxu0 %v981
  %1492 = vmatprep.subr.bf16.mxu0 %v978
  %1493 = vmatpush2.bf16.msra.mxu0 %v977
  %1494 = vmatprep.subr.bf16.mxu0 %v974
  %1495 = vmatpush2.bf16.msra.mxu0 %v973
  %1496 = vmatprep.subr.bf16.mxu0 %v970
  %1497 = vmatpush2.bf16.msra.mxu0 %v969
  %1498 = vmatprep.subr.bf16.mxu0 %v966
  %1499 = vmatpush2.bf16.msra.mxu0 %v965
  %1500 = vmatprep.mubr.bf16.mxu0 %v269
  %1501 = vmatmul.mubr.bf16.gmra.mxu0 %v268
  %v1502 = vpop.f32.mrf.mxu0
  %v1503 = vadd.f32 %v1462, %v1502
  %v1504 = vpop.f32.mrf.mxu0
  %v1505 = vadd.f32 %v1464, %v1504
  %v1506 = vpop.f32.mrf.mxu0
  %v1507 = vpop.f32.mrf.mxu0
  %1508 = vdwg.mxu0
  %1509 = vmatprep.subr.bf16.mxu0 %v1026
  %1510 = vmatpush1.bf16.msra.mxu0 %v1025
  %1511 = vmatprep.subr.bf16.mxu0 %v1022
  %1512 = vmatpush1.bf16.msra.mxu0 %v1021
  %1513 = vmatprep.subr.bf16.mxu0 %v1018
  %1514 = vmatpush1.bf16.msra.mxu0 %v1017
  %1515 = vmatprep.subr.bf16.mxu0 %v1014
  %1516 = vmatpush1.bf16.msra.mxu0 %v1013
  %1517 = vmatprep.subr.bf16.mxu0 %v1010
  %1518 = vmatpush1.bf16.msra.mxu0 %v1009
  %1519 = vmatprep.subr.bf16.mxu0 %v1006
  %1520 = vmatpush1.bf16.msra.mxu0 %v1005
  %1521 = vmatprep.subr.bf16.mxu0 %v1002
  %1522 = vmatpush1.bf16.msra.mxu0 %v1001
  %1523 = vmatprep.subr.bf16.mxu0 %v998
  %1524 = vmatpush1.bf16.msra.mxu0 %v997
  %1525 = vmatprep.subr.bf16.mxu0 %v1058
  %1526 = vmatpush2.bf16.msra.mxu0 %v1057
  %1527 = vmatprep.subr.bf16.mxu0 %v1054
  %1528 = vmatpush2.bf16.msra.mxu0 %v1053
  %1529 = vmatprep.subr.bf16.mxu0 %v1050
  %1530 = vmatpush2.bf16.msra.mxu0 %v1049
  %1531 = vmatprep.subr.bf16.mxu0 %v1046
  %1532 = vmatpush2.bf16.msra.mxu0 %v1045
  %1533 = vmatprep.subr.bf16.mxu0 %v1042
  %1534 = vmatpush2.bf16.msra.mxu0 %v1041
  %1535 = vmatprep.subr.bf16.mxu0 %v1038
  %1536 = vmatpush2.bf16.msra.mxu0 %v1037
  %1537 = vmatprep.subr.bf16.mxu0 %v1034
  %1538 = vmatpush2.bf16.msra.mxu0 %v1033
  %1539 = vmatprep.subr.bf16.mxu0 %v1030
  %1540 = vmatpush2.bf16.msra.mxu0 %v1029
  %1541 = vmatprep.mubr.bf16.mxu0 %v271
  %1542 = vmatmul.mubr.bf16.gmra.mxu0 %v270
  %v1543 = vpop.f32.mrf.mxu0
  %v1544 = vadd.f32 %v1503, %v1543
  %v1545 = vpop.f32.mrf.mxu0
  %v1546 = vadd.f32 %v1505, %v1545
  %v1547 = vpop.f32.mrf.mxu0
  %v1548 = vpop.f32.mrf.mxu0
  %1549 = vdwg.mxu0
  %1550 = vmatprep.subr.bf16.mxu0 0
  %1551 = vmatpush1.bf16.msra.mxu0 0
  %1552 = vmatprep.subr.bf16.mxu0 0
  %1553 = vmatpush1.bf16.msra.mxu0 0
  %1554 = vmatprep.subr.bf16.mxu0 0
  %1555 = vmatpush1.bf16.msra.mxu0 0
  %1556 = vmatprep.subr.bf16.mxu0 0
  %1557 = vmatpush1.bf16.msra.mxu0 0
  %1558 = vmatprep.subr.bf16.mxu0 0
  %1559 = vmatpush1.bf16.msra.mxu0 0
  %1560 = vmatprep.subr.bf16.mxu0 0
  %1561 = vmatpush1.bf16.msra.mxu0 0
  %1562 = vmatprep.subr.bf16.mxu0 0
  %1563 = vmatpush1.bf16.msra.mxu0 0
  %1564 = vmatprep.subr.bf16.mxu0 %v1062
  %1565 = vmatpush1.bf16.msra.mxu0 %v1061
  %1566 = vmatprep.subr.bf16.mxu0 0
  %1567 = vmatpush2.bf16.msra.mxu0 0
  %1568 = vmatprep.subr.bf16.mxu0 0
  %1569 = vmatpush2.bf16.msra.mxu0 0
  %1570 = vmatprep.subr.bf16.mxu0 0
  %1571 = vmatpush2.bf16.msra.mxu0 0
  %1572 = vmatprep.subr.bf16.mxu0 0
  %1573 = vmatpush2.bf16.msra.mxu0 0
  %1574 = vmatprep.subr.bf16.mxu0 0
  %1575 = vmatpush2.bf16.msra.mxu0 0
  %1576 = vmatprep.subr.bf16.mxu0 0
  %1577 = vmatpush2.bf16.msra.mxu0 0
  %1578 = vmatprep.subr.bf16.mxu0 0
  %1579 = vmatpush2.bf16.msra.mxu0 0
  %1580 = vmatprep.subr.bf16.mxu0 0
  %1581 = vmatpush2.bf16.msra.mxu0 0
  %1582 = vmatprep.mubr.bf16.mxu0 0
  %1583 = vmatmul.mubr.bf16.gmra.mxu0 %v1261
  %v1584 = vpop.f32.mrf.mxu0
  %v1585 = vadd.f32 %v1544, %v1584
  %v1586 = vpop.f32.mrf.mxu0
  %v1587 = vadd.f32 %v1546, %v1586
  %v1588 = vpop.f32.mrf.mxu0
  %v1589 = vpop.f32.mrf.mxu0
  %1590 = vdwg.mxu0
  %v1591 = vmax.f32 %v1421, 0.0
  %v1592 = vmax.f32 %v1423, 0.0
  %v1593 = vmax.f32 %v1585, 0.0
  %v1594 = vmax.f32 %v1587, 0.0
  %v1595 = vpack.c.bf16 %v1591, %v1591
  %v1596 = vpack.c.bf16 %v1592, %v1592
  %v1597 = vpack.c.bf16 %v1593, %v1593
  %v1598 = vpack.c.bf16 %v1594, %v1594
  %v1599 = vld [vmem:[%s3] sm:$0xf]
  %v1600 = vld [vmem:[%s3 + $0x4] sm:$0xf]
  %v1601 = vld [vmem:[%s3 + $0x8] sm:$0xf]
  %v1602 = vld [vmem:[%s3 + $0xc] sm:$0xf]
  %v1603 = vld [vmem:[%s3 + $0x10] sm:$0xf]
  %v1604 = vld [vmem:[%s3 + $0x14] sm:$0xf]
  %v1605 = vld [vmem:[%s3 + $0x18] sm:$0xf]
  %v1606 = vld [vmem:[%s3 + $0x1c] sm:$0xf]
  %v1607 = vld [vmem:[%s3 + $0x20] sm:$0xf]
  %v1608 = vld [vmem:[%s3 + $0x24] sm:$0xf]
  %v1609 = vld [vmem:[%s3 + $0x28] sm:$0xf]
  %v1610 = vld [vmem:[%s3 + $0x2c] sm:$0xf]
  %v1611 = vld [vmem:[%s3 + $0x30] sm:$0xf]
  %v1612 = vld [vmem:[%s3 + $0x34] sm:$0xf]
  %v1613 = vld [vmem:[%s3 + $0x38] sm:$0xf]
  %v1614 = vld [vmem:[%s3 + $0x3c] sm:$0xf]
  %v1615 = vld [vmem:[%s3 + $0x40] sm:$0xf]
  %v1616 = vld [vmem:[%s3 + $0x44] sm:$0xf]
  %v1617 = vld [vmem:[%s3 + $0x48] sm:$0xf]
  %v1618 = vld [vmem:[%s3 + $0x4c] sm:$0xf]
  %v1619 = vld [vmem:[%s3 + $0x50] sm:$0xf]
  %v1620 = vld [vmem:[%s3 + $0x54] sm:$0xf]
  %v1621 = vld [vmem:[%s3 + $0x58] sm:$0xf]
  %v1622 = vld [vmem:[%s3 + $0x5c] sm:$0xf]
  %v1623 = vld [vmem:[%s3 + $0x60] sm:$0xf]
  %v1624 = vld [vmem:[%s3 + $0x64] sm:$0xf]
  %v1625 = vld [vmem:[%s3 + $0x68] sm:$0xf]
  %v1626 = vld [vmem:[%s3 + $0x6c] sm:$0xf]
  %v1627 = vld [vmem:[%s3 + $0x70] sm:$0xf]
  %v1628 = vld [vmem:[%s3 + $0x74] sm:$0xf]
  %v1629 = vld [vmem:[%s3 + $0x78] sm:$0xf]
  %v1630 = vld [vmem:[%s3 + $0x7c] sm:$0xf]
  %v1631 = vld [vmem:[%s3 + $0x80] sm:$0xf]
  %v1632 = vld [vmem:[%s3 + $0x84] sm:$0xf]
  %v1633 = vld [vmem:[%s3 + $0x88] sm:$0xf]
  %v1634 = vld [vmem:[%s3 + $0x8c] sm:$0xf]
  %v1635 = vld [vmem:[%s3 + $0x90] sm:$0xf]
  %v1636 = vld [vmem:[%s3 + $0x94] sm:$0xf]
  %v1637 = vld [vmem:[%s3 + $0x98] sm:$0xf]
  %v1638 = vld [vmem:[%s3 + $0x9c] sm:$0xf]
  %v1639 = vld [vmem:[%s3 + $0xa0] sm:$0xf]
  %v1640 = vld [vmem:[%s3 + $0xa4] sm:$0xf]
  %v1641 = vld [vmem:[%s3 + $0xa8] sm:$0xf]
  %v1642 = vld [vmem:[%s3 + $0xac] sm:$0xf]
  %v1643 = vld [vmem:[%s3 + $0xb0] sm:$0xf]
  %v1644 = vld [vmem:[%s3 + $0xb4] sm:$0xf]
  %v1645 = vld [vmem:[%s3 + $0xb8] sm:$0xf]
  %v1646 = vld [vmem:[%s3 + $0xbc] sm:$0xf]
  %v1647 = vld [vmem:[%s3 + $0xc0] sm:$0xf]
  %v1648 = vld [vmem:[%s3 + $0xc4] sm:$0xf]
  %v1649 = vld [vmem:[%s3 + $0xc8] sm:$0xf]
  %v1650 = vld [vmem:[%s3 + $0xcc] sm:$0xf]
  %v1651 = vld [vmem:[%s3 + $0xd0] sm:$0xf]
  %v1652 = vld [vmem:[%s3 + $0xd4] sm:$0xf]
  %v1653 = vld [vmem:[%s3 + $0xd8] sm:$0xf]
  %v1654 = vld [vmem:[%s3 + $0xdc] sm:$0xf]
  %v1655 = vld [vmem:[%s3 + $0xe0] sm:$0xf]
  %v1656 = vld [vmem:[%s3 + $0xe4] sm:$0xf]
  %v1657 = vld [vmem:[%s3 + $0xe8] sm:$0xf]
  %v1658 = vld [vmem:[%s3 + $0xec] sm:$0xf]
  %v1659 = vld [vmem:[%s3 + $0xf0] sm:$0xf]
  %v1660 = vld [vmem:[%s3 + $0xf4] sm:$0xf]
  %v1661 = vld [vmem:[%s3 + $0xf8] sm:$0xf]
  %v1662 = vld [vmem:[%s3 + $0xfc] sm:$0xf]
  %v1663 = vld [vmem:[%s4] sm:$0x1]
  %v1665 = vlaneseq
  %v1666 = vshrl.u32 %v1665, 7
  %v1667 = vsub.s32 0, %v1666
  %v1668 = vrot.slane %v1663, %v1667
  %v1734 = vunpack.c.l.b16 %v1599
  %v1735 = vunpack.c.l.b16 %v1600
  %v1736 = vunpack.c.l.b16 %v1601
  %v1737 = vunpack.c.l.b16 %v1602
  %v1738 = vunpack.c.l.b16 %v1603
  %v1739 = vunpack.c.l.b16 %v1604
  %v1740 = vunpack.c.l.b16 %v1605
  %v1741 = vunpack.c.l.b16 %v1606
  %v1742 = vunpack.c.l.b16 %v1607
  %v1743 = vunpack.c.l.b16 %v1608
  %v1744 = vunpack.c.l.b16 %v1609
  %v1745 = vunpack.c.l.b16 %v1610
  %v1746 = vunpack.c.l.b16 %v1611
  %v1747 = vunpack.c.l.b16 %v1612
  %v1748 = vunpack.c.l.b16 %v1613
  %v1749 = vunpack.c.l.b16 %v1614
  %v1750 = vunpack.c.l.b16 %v1615
  %v1751 = vunpack.c.l.b16 %v1616
  %v1752 = vunpack.c.l.b16 %v1617
  %v1753 = vunpack.c.l.b16 %v1618
  %v1754 = vunpack.c.l.b16 %v1619
  %v1755 = vunpack.c.l.b16 %v1620
  %v1756 = vunpack.c.l.b16 %v1621
  %v1757 = vunpack.c.l.b16 %v1622
  %v1758 = vunpack.c.l.b16 %v1623
  %v1759 = vunpack.c.l.b16 %v1624
  %v1760 = vunpack.c.l.b16 %v1625
  %v1761 = vunpack.c.l.b16 %v1626
  %v1762 = vunpack.c.l.b16 %v1627
  %v1763 = vunpack.c.l.b16 %v1628
  %v1764 = vunpack.c.l.b16 %v1629
  %v1765 = vunpack.c.l.b16 %v1630
  %v1766 = vunpack.c.l.b16 %v1631
  %v1767 = vunpack.c.l.b16 %v1632
  %v1768 = vunpack.c.l.b16 %v1633
  %v1769 = vunpack.c.l.b16 %v1634
  %v1770 = vunpack.c.l.b16 %v1635
  %v1771 = vunpack.c.l.b16 %v1636
  %v1772 = vunpack.c.l.b16 %v1637
  %v1773 = vunpack.c.l.b16 %v1638
  %v1774 = vunpack.c.l.b16 %v1639
  %v1775 = vunpack.c.l.b16 %v1640
  %v1776 = vunpack.c.l.b16 %v1641
  %v1777 = vunpack.c.l.b16 %v1642
  %v1778 = vunpack.c.l.b16 %v1643
  %v1779 = vunpack.c.l.b16 %v1644
  %v1780 = vunpack.c.l.b16 %v1645
  %v1781 = vunpack.c.l.b16 %v1646
  %v1782 = vunpack.c.l.b16 %v1647
  %v1783 = vunpack.c.l.b16 %v1648
  %v1784 = vunpack.c.l.b16 %v1649
  %v1785 = vunpack.c.l.b16 %v1650
  %v1786 = vunpack.c.l.b16 %v1651
  %v1787 = vunpack.c.l.b16 %v1652
  %v1788 = vunpack.c.l.b16 %v1653
  %v1789 = vunpack.c.l.b16 %v1654
  %v1790 = vunpack.c.l.b16 %v1655
  %v1791 = vunpack.c.l.b16 %v1656
  %v1792 = vunpack.c.l.b16 %v1657
  %v1793 = vunpack.c.l.b16 %v1658
  %v1794 = vunpack.c.l.b16 %v1659
  %v1795 = vunpack.c.l.b16 %v1660
  %v1796 = vunpack.c.l.b16 %v1661
  %v1797 = vunpack.c.l.b16 %v1662
  %v1798 = vpack.c.b16 %v1735, %v1734
  %v1799 = vpack.c.b16 %v1737, %v1736
  %v1800 = vpack.c.b16 %v1739, %v1738
  %v1801 = vpack.c.b16 %v1741, %v1740
  %v1802 = vpack.c.b16 %v1743, %v1742
  %v1803 = vpack.c.b16 %v1745, %v1744
  %v1804 = vpack.c.b16 %v1747, %v1746
  %v1805 = vpack.c.b16 %v1749, %v1748
  %v1806 = vpack.c.b16 %v1751, %v1750
  %v1807 = vpack.c.b16 %v1753, %v1752
  %v1808 = vpack.c.b16 %v1755, %v1754
  %v1809 = vpack.c.b16 %v1757, %v1756
  %v1810 = vpack.c.b16 %v1759, %v1758
  %v1811 = vpack.c.b16 %v1761, %v1760
  %v1812 = vpack.c.b16 %v1763, %v1762
  %v1813 = vpack.c.b16 %v1765, %v1764
  %v1814 = vpack.c.b16 %v1767, %v1766
  %v1815 = vpack.c.b16 %v1769, %v1768
  %v1816 = vpack.c.b16 %v1771, %v1770
  %v1817 = vpack.c.b16 %v1773, %v1772
  %v1818 = vpack.c.b16 %v1775, %v1774
  %v1819 = vpack.c.b16 %v1777, %v1776
  %v1820 = vpack.c.b16 %v1779, %v1778
  %v1821 = vpack.c.b16 %v1781, %v1780
  %v1822 = vpack.c.b16 %v1783, %v1782
  %v1823 = vpack.c.b16 %v1785, %v1784
  %v1824 = vpack.c.b16 %v1787, %v1786
  %v1825 = vpack.c.b16 %v1789, %v1788
  %v1826 = vpack.c.b16 %v1791, %v1790
  %v1827 = vpack.c.b16 %v1793, %v1792
  %v1828 = vpack.c.b16 %v1795, %v1794
  %v1829 = vpack.c.b16 %v1797, %v1796
  %1862 = vmatprep.subr.bf16.mxu0 0
  %1863 = vmatpush1.bf16.msra.mxu0 %v1805
  %1864 = vmatprep.subr.bf16.mxu0 0
  %1865 = vmatpush1.bf16.msra.mxu0 %v1804
  %1866 = vmatprep.subr.bf16.mxu0 0
  %1867 = vmatpush1.bf16.msra.mxu0 %v1803
  %1868 = vmatprep.subr.bf16.mxu0 0
  %1869 = vmatpush1.bf16.msra.mxu0 %v1802
  %1870 = vmatprep.subr.bf16.mxu0 0
  %1871 = vmatpush1.bf16.msra.mxu0 %v1801
  %1872 = vmatprep.subr.bf16.mxu0 0
  %1873 = vmatpush1.bf16.msra.mxu0 %v1800
  %1874 = vmatprep.subr.bf16.mxu0 0
  %1875 = vmatpush1.bf16.msra.mxu0 %v1799
  %1876 = vmatprep.subr.bf16.mxu0 0
  %1877 = vmatpush1.bf16.msra.mxu0 %v1798
  %1878 = vmatprep.subr.bf16.mxu0 0
  %1879 = vmatpush2.bf16.msra.mxu0 %v1813
  %1880 = vmatprep.subr.bf16.mxu0 0
  %1881 = vmatpush2.bf16.msra.mxu0 %v1812
  %1882 = vmatprep.subr.bf16.mxu0 0
  %1883 = vmatpush2.bf16.msra.mxu0 %v1811
  %1884 = vmatprep.subr.bf16.mxu0 0
  %1885 = vmatpush2.bf16.msra.mxu0 %v1810
  %1886 = vmatprep.subr.bf16.mxu0 0
  %1887 = vmatpush2.bf16.msra.mxu0 %v1809
  %1888 = vmatprep.subr.bf16.mxu0 0
  %1889 = vmatpush2.bf16.msra.mxu0 %v1808
  %1890 = vmatprep.subr.bf16.mxu0 0
  %1891 = vmatpush2.bf16.msra.mxu0 %v1807
  %1892 = vmatprep.subr.bf16.mxu0 0
  %1893 = vmatpush2.bf16.msra.mxu0 %v1806
  %1894 = vmatprep.mubr.bf16.mxu0 %v1596
  %1895 = vmatmul.mubr.bf16.gmra.mxu0 %v1595
  %v1896 = vpop.f32.mrf.mxu0
  %v1897 = vadd.f32 %v1668, %v1896
  %v1898 = vpop.f32.mrf.mxu0
  %v1899 = vpop.f32.mrf.mxu0
  %v1900 = vpop.f32.mrf.mxu0
  %1901 = vdwg.mxu0
  %1902 = vmatprep.subr.bf16.mxu0 0
  %1903 = vmatpush1.bf16.msra.mxu0 %v1821
  %1904 = vmatprep.subr.bf16.mxu0 0
  %1905 = vmatpush1.bf16.msra.mxu0 %v1820
  %1906 = vmatprep.subr.bf16.mxu0 0
  %1907 = vmatpush1.bf16.msra.mxu0 %v1819
  %1908 = vmatprep.subr.bf16.mxu0 0
  %1909 = vmatpush1.bf16.msra.mxu0 %v1818
  %1910 = vmatprep.subr.bf16.mxu0 0
  %1911 = vmatpush1.bf16.msra.mxu0 %v1817
  %1912 = vmatprep.subr.bf16.mxu0 0
  %1913 = vmatpush1.bf16.msra.mxu0 %v1816
  %1914 = vmatprep.subr.bf16.mxu0 0
  %1915 = vmatpush1.bf16.msra.mxu0 %v1815
  %1916 = vmatprep.subr.bf16.mxu0 0
  %1917 = vmatpush1.bf16.msra.mxu0 %v1814
  %1918 = vmatprep.subr.bf16.mxu0 0
  %1919 = vmatpush2.bf16.msra.mxu0 %v1829
  %1920 = vmatprep.subr.bf16.mxu0 0
  %1921 = vmatpush2.bf16.msra.mxu0 %v1828
  %1922 = vmatprep.subr.bf16.mxu0 0
  %1923 = vmatpush2.bf16.msra.mxu0 %v1827
  %1924 = vmatprep.subr.bf16.mxu0 0
  %1925 = vmatpush2.bf16.msra.mxu0 %v1826
  %1926 = vmatprep.subr.bf16.mxu0 0
  %1927 = vmatpush2.bf16.msra.mxu0 %v1825
  %1928 = vmatprep.subr.bf16.mxu0 0
  %1929 = vmatpush2.bf16.msra.mxu0 %v1824
  %1930 = vmatprep.subr.bf16.mxu0 0
  %1931 = vmatpush2.bf16.msra.mxu0 %v1823
  %1932 = vmatprep.subr.bf16.mxu0 0
  %1933 = vmatpush2.bf16.msra.mxu0 %v1822
  %1934 = vmatprep.mubr.bf16.mxu0 %v1598
  %1935 = vmatmul.mubr.bf16.gmra.mxu0 %v1597
  %v1936 = vpop.f32.mrf.mxu0
  %v1937 = vadd.f32 %v1897, %v1936
  %v1938 = vpop.f32.mrf.mxu0
  %v1939 = vpop.f32.mrf.mxu0
  %v1940 = vpop.f32.mrf.mxu0
  %1941 = vdwg.mxu0
  %v1942 = vmax.f32 %v1937, 0.0
  %v1943 = vpack.c.bf16 %v1942, %v1942
  %v1944 = vld [vmem:[%s5] sm:$0xf]
  %v1945 = vld [vmem:[%s5 + $0x4] sm:$0xf]
  %v1946 = vld [vmem:[%s5 + $0x8] sm:$0xf]
  %v1947 = vld [vmem:[%s5 + $0xc] sm:$0xf]
  %v1948 = vld [vmem:[%s5 + $0x10] sm:$0xf]
  %v1949 = vld [vmem:[%s5 + $0x14] sm:$0xf]
  %v1950 = vld [vmem:[%s5 + $0x18] sm:$0xf]
  %v1951 = vld [vmem:[%s5 + $0x1c] sm:$0xf]
  %v1952 = vld [vmem:[%s5 + $0x20] sm:$0xf]
  %v1953 = vld [vmem:[%s5 + $0x24] sm:$0xf]
  %v1954 = vld [vmem:[%s5 + $0x28] sm:$0xf]
  %v1955 = vld [vmem:[%s5 + $0x2c] sm:$0xf]
  %v1956 = vld [vmem:[%s5 + $0x30] sm:$0xf]
  %v1957 = vld [vmem:[%s5 + $0x34] sm:$0xf]
  %v1958 = vld [vmem:[%s5 + $0x38] sm:$0xf]
  %v1959 = vld [vmem:[%s5 + $0x3c] sm:$0xf]
  %v1960 = vld [vmem:[%s6] sm:$0x1]
  %v1962 = vlaneseq
  %v1963 = vshrl.u32 %v1962, 7
  %v1964 = vsub.s32 0, %v1963
  %v1965 = vrot.slane %v1960, %v1964
  %v1983 = vunpack.c.l.b16 %v1944
  %v1984 = vunpack.c.l.b16 %v1945
  %v1985 = vunpack.c.l.b16 %v1946
  %v1986 = vunpack.c.l.b16 %v1947
  %v1987 = vunpack.c.l.b16 %v1948
  %v1988 = vunpack.c.l.b16 %v1949
  %v1989 = vunpack.c.l.b16 %v1950
  %v1990 = vunpack.c.l.b16 %v1951
  %v1991 = vunpack.c.l.b16 %v1952
  %v1992 = vunpack.c.l.b16 %v1953
  %v1993 = vunpack.c.l.b16 %v1954
  %v1994 = vunpack.c.l.b16 %v1955
  %v1995 = vunpack.c.l.b16 %v1956
  %v1996 = vunpack.c.l.b16 %v1957
  %v1997 = vunpack.c.l.b16 %v1958
  %v1998 = vunpack.c.l.b16 %v1959
  %v1999 = vpack.c.b16 %v1984, %v1983
  %v2000 = vpack.c.b16 %v1986, %v1985
  %v2001 = vpack.c.b16 %v1988, %v1987
  %v2002 = vpack.c.b16 %v1990, %v1989
  %v2003 = vpack.c.b16 %v1992, %v1991
  %v2004 = vpack.c.b16 %v1994, %v1993
  %v2005 = vpack.c.b16 %v1996, %v1995
  %v2006 = vpack.c.b16 %v1998, %v1997
  %2015 = vmatprep.subr.bf16.mxu0 0
  %2016 = vmatpush1.bf16.msra.mxu0 %v2006
  %2017 = vmatprep.subr.bf16.mxu0 0
  %2018 = vmatpush1.bf16.msra.mxu0 %v2005
  %2019 = vmatprep.subr.bf16.mxu0 0
  %2020 = vmatpush1.bf16.msra.mxu0 %v2004
  %2021 = vmatprep.subr.bf16.mxu0 0
  %2022 = vmatpush1.bf16.msra.mxu0 %v2003
  %2023 = vmatprep.subr.bf16.mxu0 0
  %2024 = vmatpush1.bf16.msra.mxu0 %v2002
  %2025 = vmatprep.subr.bf16.mxu0 0
  %2026 = vmatpush1.bf16.msra.mxu0 %v2001
  %2027 = vmatprep.subr.bf16.mxu0 0
  %2028 = vmatpush1.bf16.msra.mxu0 %v2000
  %2029 = vmatprep.subr.bf16.mxu0 0
  %2030 = vmatpush1.bf16.msra.mxu0 %v1999
  %2031 = vmatprep.subr.bf16.mxu0 0
  %2032 = vmatpush2.bf16.msra.mxu0 0
  %2033 = vmatprep.subr.bf16.mxu0 0
  %2034 = vmatpush2.bf16.msra.mxu0 0
  %2035 = vmatprep.subr.bf16.mxu0 0
  %2036 = vmatpush2.bf16.msra.mxu0 0
  %2037 = vmatprep.subr.bf16.mxu0 0
  %2038 = vmatpush2.bf16.msra.mxu0 0
  %2039 = vmatprep.subr.bf16.mxu0 0
  %2040 = vmatpush2.bf16.msra.mxu0 0
  %2041 = vmatprep.subr.bf16.mxu0 0
  %2042 = vmatpush2.bf16.msra.mxu0 0
  %2043 = vmatprep.subr.bf16.mxu0 0
  %2044 = vmatpush2.bf16.msra.mxu0 0
  %2045 = vmatprep.subr.bf16.mxu0 0
  %2046 = vmatpush2.bf16.msra.mxu0 0
  %2047 = vmatprep.mubr.bf16.mxu0 0
  %2048 = vmatmul.mubr.bf16.gmra.mxu0 %v1943
  %v2049 = vpop.f32.mrf.mxu0
  %v2050 = vadd.f32 %v1965, %v2049
  %v2051 = vpop.f32.mrf.mxu0
  %v2052 = vpop.f32.mrf.mxu0
  %v2053 = vpop.f32.mrf.mxu0
  %2054 = vdwg.mxu0
  %v2055 = vmax.f32 %v2050, 0.0
  %v2056 = vpack.c.bf16 %v2055, %v2055
  %v2057 = vld [vmem:[%s7] sm:$0xf]
  %v2058 = vld [vmem:[%s7 + $0x4] sm:$0xf]
  %v2059 = vld [vmem:[%s7 + $0x8] sm:$0xf]
  %v2060 = vld [vmem:[%s7 + $0xc] sm:$0xf]
  %v2061 = vld [vmem:[%s7 + $0x10] sm:$0xf]
  %v2062 = vld [vmem:[%s7 + $0x14] sm:$0xf]
  %v2063 = vld [vmem:[%s7 + $0x18] sm:$0xf]
  %v2064 = vld [vmem:[%s7 + $0x1c] sm:$0xf]
  %v2065 = vld [vmem:[%s8] sm:$0x1]
  %v2067 = vlaneseq
  %v2068 = vshrl.u32 %v2067, 7
  %v2069 = vsub.s32 0, %v2068
  %v2070 = vrot.slane %v2065, %v2069
  %v2080 = vunpack.c.l.b16 %v2057
  %v2081 = vunpack.c.l.b16 %v2058
  %v2082 = vunpack.c.l.b16 %v2059
  %v2083 = vunpack.c.l.b16 %v2060
  %v2084 = vunpack.c.l.b16 %v2061
  %v2085 = vunpack.c.l.b16 %v2062
  %v2086 = vunpack.c.l.b16 %v2063
  %v2087 = vunpack.c.l.b16 %v2064
  %v2088 = vpack.c.b16 %v2081, %v2080
  %v2089 = vpack.c.b16 %v2083, %v2082
  %v2090 = vpack.c.b16 %v2085, %v2084
  %v2091 = vpack.c.b16 %v2087, %v2086
  %vm2096 = vcmask 523264
  %v2098 = vsel %vm2096, %v2056, 0
  %2100 = vmatprep.subr.bf16.mxu0 0
  %2101 = vmatpush1.bf16.msra.mxu0 0
  %2102 = vmatprep.subr.bf16.mxu0 0
  %2103 = vmatpush1.bf16.msra.mxu0 0
  %2104 = vmatprep.subr.bf16.mxu0 0
  %2105 = vmatpush1.bf16.msra.mxu0 0
  %2106 = vmatprep.subr.bf16.mxu0 0
  %2107 = vmatpush1.bf16.msra.mxu0 0
  %2108 = vmatprep.subr.bf16.mxu0 0
  %2109 = vmatpush1.bf16.msra.mxu0 %v2091
  %2110 = vmatprep.subr.bf16.mxu0 0
  %2111 = vmatpush1.bf16.msra.mxu0 %v2090
  %2112 = vmatprep.subr.bf16.mxu0 0
  %2113 = vmatpush1.bf16.msra.mxu0 %v2089
  %2114 = vmatprep.subr.bf16.mxu0 0
  %2115 = vmatpush1.bf16.msra.mxu0 %v2088
  %2116 = vmatprep.subr.bf16.mxu0 0
  %2117 = vmatpush2.bf16.msra.mxu0 0
  %2118 = vmatprep.subr.bf16.mxu0 0
  %2119 = vmatpush2.bf16.msra.mxu0 0
  %2120 = vmatprep.subr.bf16.mxu0 0
  %2121 = vmatpush2.bf16.msra.mxu0 0
  %2122 = vmatprep.subr.bf16.mxu0 0
  %2123 = vmatpush2.bf16.msra.mxu0 0
  %2124 = vmatprep.subr.bf16.mxu0 0
  %2125 = vmatpush2.bf16.msra.mxu0 0
  %2126 = vmatprep.subr.bf16.mxu0 0
  %2127 = vmatpush2.bf16.msra.mxu0 0
  %2128 = vmatprep.subr.bf16.mxu0 0
  %2129 = vmatpush2.bf16.msra.mxu0 0
  %2130 = vmatprep.subr.bf16.mxu0 0
  %2131 = vmatpush2.bf16.msra.mxu0 0
  %2132 = vmatprep.mubr.bf16.mxu0 0
  %2133 = vmatmul.mubr.bf16.gmra.mxu0 %v2098
  %v2134 = vpop.f32.mrf.mxu0
  %v2135 = vadd.f32 %v2070, %v2134
  %v2136 = vpop.f32.mrf.mxu0
  %v2137 = vpop.f32.mrf.mxu0
  %v2138 = vpop.f32.mrf.mxu0
  %2139 = vdwg.mxu0
  %2140 = vst [vmem:[%s9] sm:$0xff] %v2135
  // Predicated region
  $region38: #{mnist_mlp_forward.1} parent=0 // pred_check
    _
  $region39: #{mnist_mlp_forward.1} parent=0 // pred_check_branch
    %2142 = sbr.rel (0) target = $region41
  $region40: #{mnist_mlp_forward.1} parent=0 // pred_region
    _
  $region41: #{mnist_mlp_forward.1} parent=0 // pred_fallthru
    _
  // Predicated region
  $region42: #{mnist_mlp_forward.1} parent=0 // pred_check
    _
  $region43: #{mnist_mlp_forward.1} parent=0 // pred_check_branch
    %2144 = sbr.rel (0) target = $region45
  $region44: #{mnist_mlp_forward.1} parent=0 // pred_region
    _
  $region45: #{mnist_mlp_forward.1} parent=0 // pred_fallthru
    _

</llo_original>
